<compile_context>
chip_gen: v7x
topology: tpu7x:2x2x1
jax: 0.10.0
libtpu: 0.0.40
codegen_flags: <defaults>
</compile_context>

<pallas_src>
import functools
import math

import jax
import jax.numpy as jnp
from jax.experimental import pallas as pl
from jax.experimental.pallas import tpu as pltpu

LANE = 128


def _round_up(x, m):
    return ((x + m - 1) // m) * m


def _pad_cols(x, target):
    pad = target - x.shape[-1]
    return x if pad == 0 else jnp.pad(x, ((0, 0), (0, pad)))


def _agg_kernel(adj_ref, xw_ref, b_ref, out_ref, acc_ref, *, apply_relu):
    """One row block: out[i,:] = [relu]( sum_k A_norm[i,k] @ XW[k,:] + b )."""
    k = pl.program_id(1)

    @pl.when(k == 0)
    def _():
        acc_ref[...] = jnp.zeros_like(acc_ref)

    # Tiled aggregation over the dense normalized adjacency (bf16 in, f32 accumulate).
    acc_ref[...] += jnp.dot(adj_ref[...], xw_ref[...],
                            preferred_element_type=jnp.float32)

    @pl.when(k == pl.num_programs(1) - 1)
    def _():
        h = acc_ref[...] + b_ref[...]
        if apply_relu:
            h = jnp.maximum(h, 0.0)
        out_ref[...] = h.astype(out_ref.dtype)


def _gcn_aggregate(adj, xw, b, *, apply_relu, out_dtype, tm, tk):
    """adj: [Np, Np] bf16, xw: [Np, F] bf16 (F a multiple of 128), b: [1, F] f32."""
    n = adj.shape[0]
    f = xw.shape[1]
    grid = (n // tm, n // tk)
    kernel = functools.partial(_agg_kernel, apply_relu=apply_relu)

    flops = 2 * n * n * f
    bytes_accessed = int(
        adj.size * adj.dtype.itemsize                 # adjacency streamed once
        + grid[0] * xw.size * xw.dtype.itemsize       # XW re-streamed per row block
        + b.size * b.dtype.itemsize
        + n * f * jnp.dtype(out_dtype).itemsize)

    return pl.pallas_call(
        kernel,
        out_shape=jax.ShapeDtypeStruct((n, f), out_dtype),
        grid_spec=pltpu.PrefetchScalarGridSpec(
            num_scalar_prefetch=0,
            grid=grid,
            in_specs=[
                # Adjacency tile: the single mem-bound stream.  If profiling still shows
                # exposed DMA at large N, add pipeline_mode=pl.Buffered(3) here.
                pl.BlockSpec((tm, tk), lambda i, k: (i, k)),
                pl.BlockSpec((tk, f), lambda i, k: (k, 0)),   # pre-transformed features
                pl.BlockSpec((1, f), lambda i, k: (0, 0)),    # bias (VMEM resident)
            ],
            out_specs=pl.BlockSpec((tm, f), lambda i, k: (i, 0)),
            scratch_shapes=[pltpu.VMEM((tm, f), jnp.float32)],
        ),
        compiler_params=pltpu.CompilerParams(
            dimension_semantics=("parallel", "arbitrary"),
            vmem_limit_bytes=48 * 1024 * 1024,   # fits v7x's 64 MiB VMEM; ample on v5e/v6e
        ),
        cost_estimate=pl.CostEstimate(flops=flops, transcendentals=0,
                                      bytes_accessed=bytes_accessed),
    )(adj, xw, b)


def _auto_tiles(n):
    """Heuristic tiles: >=2 row blocks (v7x megacore) and big lane-aligned tiles for
    large graphs.  For production sizes sweep tm=tk=512 (v5e/v6e) / tm=256,tk=512 (v7x)."""
    if n < 2 * LANE:
        return n, n          # tiny graph: single full-extent block
    if n >= 2048:
        return 512, 512
    if n >= 512:
        return 256, 256
    return 128, 128


def gcn_conv_model_forward(features, adj_norm, params, *, tm=None, tk=None):
    """Full GCNConvModel forward (eval mode). features: [N, Fin] f32, adj_norm: [N, N] f32."""
    n = features.shape[0]
    feat_ch = params["w1"].shape[1]
    out_ch = params["w2"].shape[1]

    if tm is None or tk is None:
        d_tm, d_tk = _auto_tiles(n)
        tm = d_tm if tm is None else tm
        tk = d_tk if tk is None else tk
    n_pad = _round_up(n, math.lcm(tm, tk))

    # Lane-dense channel dims (OUT_CH=3 -> 128 etc.); padded weight/bias columns are zero.
    feat_pad = _round_up(feat_ch, LANE)
    out_pad = _round_up(out_ch, LANE)
    w1 = _pad_cols(params["w1"], feat_pad)
    b1 = _pad_cols(params["b1"], feat_pad)
    w2 = _pad_cols(jnp.pad(params["w2"], ((0, feat_pad - feat_ch), (0, 0))), out_pad)
    b2 = _pad_cols(params["b2"], out_pad)

    if n_pad != n:
        # Zero rows/cols of A_norm are inert, so padded rows never leak into valid outputs.
        # TODO(synk): for very large N, handle the ragged tail with a masked epilogue instead
        # of materializing a padded copy of the N x N adjacency.
        pad = n_pad - n
        adj_norm = jnp.pad(adj_norm, ((0, pad), (0, pad)))
        features = jnp.pad(features, ((0, pad), (0, 0)))

    adj_bf16 = adj_norm.astype(jnp.bfloat16)

    # ---- Layer 1: transform (cheap XLA matmul) then Pallas aggregation + bias + relu ----
    xw1 = jnp.dot(features, w1, preferred_element_type=jnp.float32).astype(jnp.bfloat16)
    h = _gcn_aggregate(adj_bf16, xw1, b1, apply_relu=True,
                       out_dtype=jnp.bfloat16, tm=tm, tk=tk)
    # TODO(synk): F.dropout(p=0.7) is stochastic in training; identity in eval mode.

    # ---- Layer 2: same pattern, no relu; output channels padded to 128 (lane-dense) ----
    hw2 = jnp.dot(h, w2.astype(jnp.bfloat16),
                  preferred_element_type=jnp.float32).astype(jnp.bfloat16)
    out = _gcn_aggregate(adj_bf16, hw2, b2, apply_relu=False,
                         out_dtype=jnp.float32, tm=tm, tk=tk)
    return out[:n, :out_ch]


def build_gcn_adjacency(edge_index, num_nodes):
    """Dense D^{-1/2} (A + I) D^{-1/2}, matching PyG GCNConv's gcn_norm
    (add_self_loops=True, unweighted edges).  A[i, j] counts edges j -> i."""
    src, dst = edge_index[0], edge_index[1]
    a = jnp.zeros((num_nodes, num_nodes), jnp.float32).at[dst, src].add(1.0)
    a = a + jnp.eye(num_nodes, dtype=jnp.float32)          # self loops
    deg = a.sum(axis=1)                                    # in-degree incl. self loop (>= 1)
    dinv = jax.lax.rsqrt(deg)
    return a * dinv[:, None] * dinv[None, :]


def init_params(key, in_channels, feature_channels, out_channels):
    ks = jax.random.split(key, 4)

    def lin(k, fan_in, fan_out):
        bound = 1.0 / jnp.sqrt(jnp.float32(fan_in))
        return jax.random.uniform(k, (fan_in, fan_out), jnp.float32, -bound, bound)

    return {
        "w1": lin(ks[0], in_channels, feature_channels),
        "b1": jax.random.uniform(ks[1], (1, feature_channels), jnp.float32, -0.05, 0.05),
        "w2": lin(ks[2], feature_channels, out_channels),
        "b2": jax.random.uniform(ks[3], (1, out_channels), jnp.float32, -0.05, 0.05),
    }


def reference_forward(features, adj_norm, params):
    """Pure-JAX f32 reference of the same forward pass (correctness check)."""
    h = jnp.maximum(adj_norm @ features @ params["w1"] + params["b1"], 0.0)
    return adj_norm @ h @ params["w2"] + params["b2"]


if __name__ == "__main__":
    # Small shapes consistent with the module's forward (scaled down from the
    # in=1024 / feat=128 / out=3 defaults): features [N, IN_CH], edges2 [2, E].
    N, IN_CH, FEAT_CH, OUT_CH, E = 256, 64, 32, 3, 1024

    key = jax.random.PRNGKey(0)
    k_feat, k_src, k_dst, k_par = jax.random.split(key, 4)

    features = jax.random.normal(k_feat, (N, IN_CH), jnp.float32)
    edges2 = jnp.stack([
        jax.random.randint(k_src, (E,), 0, N, jnp.int32),
        jax.random.randint(k_dst, (E,), 0, N, jnp.int32),
    ])
    # (edges, edge_features, additional_feature are unused by the forward pass
    #  when use_additional_channels=False, matching the module defaults.)

    adj_norm = build_gcn_adjacency(edges2, N)
    params = init_params(k_par, IN_CH, FEAT_CH, OUT_CH)

    out = jax.jit(gcn_conv_model_forward)(features, adj_norm, params)
    out = jax.block_until_ready(out)

    ref = reference_forward(features, adj_norm, params)
    assert out.shape == (N, OUT_CH)
    # bf16 adjacency / streamed features => loosened tolerance (f32 reference).
    assert jnp.allclose(out, ref, atol=1e-2, rtol=1e-2)

    print("KERNEL_OK")
</pallas_src>

<mosaic_0001>
module attributes {stable_mosaic.version = 11 : i64} {
  func.func @_agg_kernel(%arg0: i32, %arg1: i32, %arg2: memref<128x128xbf16, #tpu.memory_space<vmem>>, %arg3: memref<128x128xbf16, #tpu.memory_space<vmem>>, %arg4: memref<1x128xf32, #tpu.memory_space<vmem>>, %arg5: memref<128x128xbf16, #tpu.memory_space<vmem>>, %arg6: memref<128x128xf32, #tpu.memory_space<vmem>>) attributes {dimension_semantics = [#tpu.dimension_semantics<parallel>, #tpu.dimension_semantics<arbitrary>], iteration_bounds = array<i64: 2, 2>, scalar_prefetch = 0 : i64, scratch_operands = 1 : i64, tpu.core_type = #tpu.core_type<tc>, window_params = [{transform_indices = @transform_0, window_bounds = array<i64: 128, 128>}, {transform_indices = @transform_1, window_bounds = array<i64: 128, 128>}, {pipeline_mode = #tpu.pipeline_mode<synchronous>, transform_indices = @transform_2, window_bounds = array<i64: 1, 128>}, {transform_indices = @transform_3, window_bounds = array<i64: 128, 128>}]} {
    %c0_i32 = arith.constant 0 : i32
    %0 = arith.cmpi eq, %arg1, %c0_i32 : i32
    %1 = arith.extui %0 : i1 to i32
    %c0_i32_0 = arith.constant 0 : i32
    %2 = arith.cmpi ne, %1, %c0_i32_0 : i32
    scf.if %2 {
      %cst_9 = arith.constant 0.000000e+00 : f32
      %12 = vector.broadcast %cst_9 : f32 to vector<128x128xf32>
      %c0_10 = arith.constant 0 : index
      %c0_11 = arith.constant 0 : index
      %13 = vector.load %arg6[%c0_10, %c0_11] : memref<128x128xf32, #tpu.memory_space<vmem>>, vector<128x128xf32>
      tpu.vector_store %arg6[%c0_10, %c0_11], %12 {strides = array<i32>} : memref<128x128xf32, #tpu.memory_space<vmem>>, vector<128x128xf32>,
    } else {
    }
    %c0 = arith.constant 0 : index
    %c0_1 = arith.constant 0 : index
    %3 = vector.load %arg6[%c0, %c0_1] : memref<128x128xf32, #tpu.memory_space<vmem>>, vector<128x128xf32>
    %c0_2 = arith.constant 0 : index
    %c0_3 = arith.constant 0 : index
    %4 = vector.load %arg2[%c0_2, %c0_3] : memref<128x128xbf16, #tpu.memory_space<vmem>>, vector<128x128xbf16>
    %c0_4 = arith.constant 0 : index
    %c0_5 = arith.constant 0 : index
    %5 = vector.load %arg3[%c0_4, %c0_5] : memref<128x128xbf16, #tpu.memory_space<vmem>>, vector<128x128xbf16>
    %cst = arith.constant dense<0.000000e+00> : vector<128x128xf32>
    %6 = tpu.matmul %4, %5, %cst {dimension_numbers = #tpu.dot_dimension_numbers<[1], [0], [0], [1], [0, 0, 1, 1], [], []>} : vector<128x128xbf16>, vector<128x128xbf16>, vector<128x128xf32> -> vector<128x128xf32>
    %7 = arith.addf %3, %6 : vector<128x128xf32>
    %c0_6 = arith.constant 0 : index
    %c0_7 = arith.constant 0 : index
    %8 = vector.load %arg6[%c0_6, %c0_7] : memref<128x128xf32, #tpu.memory_space<vmem>>, vector<128x128xf32>
    tpu.vector_store %arg6[%c0_6, %c0_7], %7 {strides = array<i32>} : memref<128x128xf32, #tpu.memory_space<vmem>>, vector<128x128xf32>,
    %c1_i32 = arith.constant 1 : i32
    %9 = arith.cmpi eq, %arg1, %c1_i32 : i32
    %10 = arith.extui %9 : i1 to i32
    %c0_i32_8 = arith.constant 0 : i32
    %11 = arith.cmpi ne, %10, %c0_i32_8 : i32
    scf.if %11 {
      %c0_9 = arith.constant 0 : index
      %c0_10 = arith.constant 0 : index
      %12 = vector.load %arg6[%c0_9, %c0_10] : memref<128x128xf32, #tpu.memory_space<vmem>>, vector<128x128xf32>
      %c0_11 = arith.constant 0 : index
      %c0_12 = arith.constant 0 : index
      %13 = vector.load %arg4[%c0_11, %c0_12] : memref<1x128xf32, #tpu.memory_space<vmem>>, vector<1x128xf32>
      %14 = vector.broadcast %13 : vector<1x128xf32> to vector<128x128xf32>
      %15 = arith.addf %12, %14 : vector<128x128xf32>
      %cst_13 = arith.constant 0.000000e+00 : f32
      %16 = vector.broadcast %cst_13 : f32 to vector<128x128xf32>
      %17 = arith.maximumf %15, %16 : vector<128x128xf32>
      %18 = arith.truncf %17 : vector<128x128xf32> to vector<128x128xbf16>
      %c0_14 = arith.constant 0 : index
      %c0_15 = arith.constant 0 : index
      %19 = vector.load %arg5[%c0_14, %c0_15] : memref<128x128xbf16, #tpu.memory_space<vmem>>, vector<128x128xbf16>
      tpu.vector_store %arg5[%c0_14, %c0_15], %18 {strides = array<i32>} : memref<128x128xbf16, #tpu.memory_space<vmem>>, vector<128x128xbf16>,
    } else {
    }
    return
  }
  func.func @transform_0(%arg0: i32, %arg1: i32) -> (i32, i32) {
    %c0_i32 = arith.constant 0 : i32
    return %arg0, %arg1 : i32, i32
  }
  func.func @transform_1(%arg0: i32, %arg1: i32) -> (i32, i32) {
    %c0_i32 = arith.constant 0 : i32
    %c0_i32_0 = arith.constant 0 : i32
    return %arg1, %c0_i32 : i32, i32
  }
  func.func @transform_2(%arg0: i32, %arg1: i32) -> (i32, i32) {
    %c0_i32 = arith.constant 0 : i32
    %c0_i32_0 = arith.constant 0 : i32
    %c0_i32_1 = arith.constant 0 : i32
    return %c0_i32, %c0_i32_0 : i32, i32
  }
  func.func @transform_3(%arg0: i32, %arg1: i32) -> (i32, i32) {
    %c0_i32 = arith.constant 0 : i32
    %c0_i32_0 = arith.constant 0 : i32
    return %arg0, %c0_i32 : i32, i32
  }
}

module attributes {stable_mosaic.version = 11 : i64} {
  func.func @_agg_kernel(%arg0: i32, %arg1: i32, %arg2: memref<128x128xbf16, #tpu.memory_space<vmem>>, %arg3: memref<128x128xbf16, #tpu.memory_space<vmem>>, %arg4: memref<1x128xf32, #tpu.memory_space<vmem>>, %arg5: memref<128x128xf32, #tpu.memory_space<vmem>>, %arg6: memref<128x128xf32, #tpu.memory_space<vmem>>) attributes {dimension_semantics = [#tpu.dimension_semantics<parallel>, #tpu.dimension_semantics<arbitrary>], iteration_bounds = array<i64: 2, 2>, scalar_prefetch = 0 : i64, scratch_operands = 1 : i64, tpu.core_type = #tpu.core_type<tc>, window_params = [{transform_indices = @transform_0, window_bounds = array<i64: 128, 128>}, {transform_indices = @transform_1, window_bounds = array<i64: 128, 128>}, {pipeline_mode = #tpu.pipeline_mode<synchronous>, transform_indices = @transform_2, window_bounds = array<i64: 1, 128>}, {transform_indices = @transform_3, window_bounds = array<i64: 128, 128>}]} {
    %c0_i32 = arith.constant 0 : i32
    %0 = arith.cmpi eq, %arg1, %c0_i32 : i32
    %1 = arith.extui %0 : i1 to i32
    %c0_i32_0 = arith.constant 0 : i32
    %2 = arith.cmpi ne, %1, %c0_i32_0 : i32
    scf.if %2 {
      %cst_9 = arith.constant 0.000000e+00 : f32
      %12 = vector.broadcast %cst_9 : f32 to vector<128x128xf32>
      %c0_10 = arith.constant 0 : index
      %c0_11 = arith.constant 0 : index
      %13 = vector.load %arg6[%c0_10, %c0_11] : memref<128x128xf32, #tpu.memory_space<vmem>>, vector<128x128xf32>
      tpu.vector_store %arg6[%c0_10, %c0_11], %12 {strides = array<i32>} : memref<128x128xf32, #tpu.memory_space<vmem>>, vector<128x128xf32>,
    } else {
    }
    %c0 = arith.constant 0 : index
    %c0_1 = arith.constant 0 : index
    %3 = vector.load %arg6[%c0, %c0_1] : memref<128x128xf32, #tpu.memory_space<vmem>>, vector<128x128xf32>
    %c0_2 = arith.constant 0 : index
    %c0_3 = arith.constant 0 : index
    %4 = vector.load %arg2[%c0_2, %c0_3] : memref<128x128xbf16, #tpu.memory_space<vmem>>, vector<128x128xbf16>
    %c0_4 = arith.constant 0 : index
    %c0_5 = arith.constant 0 : index
    %5 = vector.load %arg3[%c0_4, %c0_5] : memref<128x128xbf16, #tpu.memory_space<vmem>>, vector<128x128xbf16>
    %cst = arith.constant dense<0.000000e+00> : vector<128x128xf32>
    %6 = tpu.matmul %4, %5, %cst {dimension_numbers = #tpu.dot_dimension_numbers<[1], [0], [0], [1], [0, 0, 1, 1], [], []>} : vector<128x128xbf16>, vector<128x128xbf16>, vector<128x128xf32> -> vector<128x128xf32>
    %7 = arith.addf %3, %6 : vector<128x128xf32>
    %c0_6 = arith.constant 0 : index
    %c0_7 = arith.constant 0 : index
    %8 = vector.load %arg6[%c0_6, %c0_7] : memref<128x128xf32, #tpu.memory_space<vmem>>, vector<128x128xf32>
    tpu.vector_store %arg6[%c0_6, %c0_7], %7 {strides = array<i32>} : memref<128x128xf32, #tpu.memory_space<vmem>>, vector<128x128xf32>,
    %c1_i32 = arith.constant 1 : i32
    %9 = arith.cmpi eq, %arg1, %c1_i32 : i32
    %10 = arith.extui %9 : i1 to i32
    %c0_i32_8 = arith.constant 0 : i32
    %11 = arith.cmpi ne, %10, %c0_i32_8 : i32
    scf.if %11 {
      %c0_9 = arith.constant 0 : index
      %c0_10 = arith.constant 0 : index
      %12 = vector.load %arg6[%c0_9, %c0_10] : memref<128x128xf32, #tpu.memory_space<vmem>>, vector<128x128xf32>
      %c0_11 = arith.constant 0 : index
      %c0_12 = arith.constant 0 : index
      %13 = vector.load %arg4[%c0_11, %c0_12] : memref<1x128xf32, #tpu.memory_space<vmem>>, vector<1x128xf32>
      %14 = vector.broadcast %13 : vector<1x128xf32> to vector<128x128xf32>
      %15 = arith.addf %12, %14 : vector<128x128xf32>
      %c0_13 = arith.constant 0 : index
      %c0_14 = arith.constant 0 : index
      %16 = vector.load %arg5[%c0_13, %c0_14] : memref<128x128xf32, #tpu.memory_space<vmem>>, vector<128x128xf32>
      tpu.vector_store %arg5[%c0_13, %c0_14], %15 {strides = array<i32>} : memref<128x128xf32, #tpu.memory_space<vmem>>, vector<128x128xf32>,
    } else {
    }
    return
  }
  func.func @transform_0(%arg0: i32, %arg1: i32) -> (i32, i32) {
    %c0_i32 = arith.constant 0 : i32
    return %arg0, %arg1 : i32, i32
  }
  func.func @transform_1(%arg0: i32, %arg1: i32) -> (i32, i32) {
    %c0_i32 = arith.constant 0 : i32
    %c0_i32_0 = arith.constant 0 : i32
    return %arg1, %c0_i32 : i32, i32
  }
  func.func @transform_2(%arg0: i32, %arg1: i32) -> (i32, i32) {
    %c0_i32 = arith.constant 0 : i32
    %c0_i32_0 = arith.constant 0 : i32
    %c0_i32_1 = arith.constant 0 : i32
    return %c0_i32, %c0_i32_0 : i32, i32
  }
  func.func @transform_3(%arg0: i32, %arg1: i32) -> (i32, i32) {
    %c0_i32 = arith.constant 0 : i32
    %c0_i32_0 = arith.constant 0 : i32
    return %arg0, %c0_i32 : i32, i32
  }
}

</mosaic_0001>

<llo_original>
// kernel: gcn_conv_model_forward.2
$region0: #{gcn_conv_model_forward.2}
  #allocation0 [shape = 'u32[]', space=smem, size = 0x4, offset = 0x4, fixed_abs, tag = 'smem constant byte address 0x4 - core index']
  #allocation1 [shape = 'u32[144,128]{1,0:T(1,128)}', space=vmem, size = 0x12000, scoped, tag = 'internal scratch']
  #allocation2 [shape = 'f32[128,128]{1,0:T(8,128)}', space=vmem, size = 0x10000, scoped, tag = 'scratch operand']
  %s0 = inlined_call_operand.vmem [shape: bf16[256,256], index: 0, kind: input, shape index: {}]
  %s1 = inlined_call_operand.vmem [shape: bf16[256,128], index: 1, kind: input, shape index: {}]
  %s2 = inlined_call_operand.vmem [shape: f32[1,128], index: 2, kind: input, shape index: {}]
  %s3 = inlined_call_operand.vmem [shape: bf16[256,128], index: 3, kind: output, shape index: {}]
  %s4 = sld [smem:[#allocation0]]
  $region94: #{gcn_conv_model_forward.2} parent=0
    _
  %s6 = ssub.s32 1, %s4
  %s7 = scalar_select 0, %s6, %s4
  $region1: #{gcn_conv_model_forward.2} parent=0
    #allocation3 [shape = 'u8[65536]{0}', space=vmem, size = 0x10000, scoped, tag = 'input window, operand 0']
    loop: start=0, step=1, limit=6
    $region2: #{gcn_conv_model_forward.2} parent=1 // loop_pre_header
      _
    $region3: #{gcn_conv_model_forward.2} parent=1 // loop_header
      %s9 = sphi 0, %s13
      %p10 = scmp.ge.s32.totalorder %s9, 6
      %s16 = sphi 0, %s28
      %s17 = sphi 0, %s24
      %s18 = sphi 0, %s16
      %s19 = sphi 0, %s17
      %s20 = sphi 0, %s18
      %s21 = sphi 0, %s19
      %s33 = sphi 0, %s35
      %s36 = sphi 0, %s33
      %s37 = sphi 0, %s36
      %s53 = sphi 0, %s37
      %s59 = sphi 0, %s61
      %s62 = sphi 0, %s59
      %s63 = sphi 0, %s62
      %s79 = sphi 0, %s63
      %s83 = sphi 0, %s83
      %s85 = sphi 0, %s83
      %s86 = sphi 0, %s85
      %s100 = sphi 0, %s86
      %s106 = sphi 0, %s108
      %s109 = sphi 0, %s106
      %s110 = sphi 0, %s109
      %s126 = sphi 0, %s110
    $region4: #{gcn_conv_model_forward.2} parent=1 // loop_header_branch
      %12 = sbr.rel (%p10) target = $region8
    $region5: #{gcn_conv_model_forward.2} parent=1 // loop_body
      %s14 = ssub.s32 %s9, 1
      %s15 = ssub.s32 %s9, 2
      %s22 = sadd.s32 1, %s17
      %p23 = scmp.ge.s32.totalorder %s22, 2
      %s24 = scalar_select %p23, 0, %s22
      %s25 = sadd.s32 1, %s16
      %s26 = scalar_select %p23, %s25, %s16
      %p27 = scmp.ge.s32.totalorder %s26, 2
      %s28 = scalar_select %p27, 0, %s26
      %s29 = ssub.s32 %s16, %s28
      %s30 = ssub.s32 %s17, %s24
      %s31 = sor.u32 %s29, %s30
      %p32 = scmp.eq.s32.totalorder %s31, 0
      %s34 = sadd.s32 %s33, 1
      %s35 = scalar_select %p32, %s33, %s34
      %p38 = pneg %p32
      %p39 = scmp.eq.s32.totalorder %s9, 3
      %p40 = por %p38, %p39
      %p41 = scmp.ne.s32.totalorder %s33, %s36
      %p42 = scmp.eq.s32.totalorder %s9, 0
      %p43 = por %p41, %p42
      %p44 = scmp.ne.s32.totalorder %s33, %s36
      %p45 = scmp.eq.s32.totalorder %s14, 3
      %p46 = por %p44, %p45
      %p47 = scmp.ne.s32.totalorder %s36, %s37
      %p48 = scmp.eq.s32.totalorder %s14, 0
      %p49 = por %p47, %p48
      %p50 = scmp.ne.s32.totalorder %s36, %s37
      %p51 = scmp.eq.s32.totalorder %s15, 3
      %p52 = por %p50, %p51
      %p54 = scmp.ne.s32.totalorder %s37, %s53
      %p55 = scmp.eq.s32.totalorder %s15, 0
      %p56 = por %p54, %p55
      %s57 = ssub.s32 %s17, %s24
      %p58 = scmp.eq.s32.totalorder %s57, 0
      %s60 = sadd.s32 %s59, 1
      %s61 = scalar_select %p58, %s59, %s60
      %p64 = pneg %p58
      %p65 = scmp.eq.s32.totalorder %s9, 3
      %p66 = por %p64, %p65
      %p67 = scmp.ne.s32.totalorder %s59, %s62
      %p68 = scmp.eq.s32.totalorder %s9, 0
      %p69 = por %p67, %p68
      %p70 = scmp.ne.s32.totalorder %s59, %s62
      %p71 = scmp.eq.s32.totalorder %s14, 3
      %p72 = por %p70, %p71
      %p73 = scmp.ne.s32.totalorder %s62, %s63
      %p74 = scmp.eq.s32.totalorder %s14, 0
      %p75 = por %p73, %p74
      %p76 = scmp.ne.s32.totalorder %s62, %s63
      %p77 = scmp.eq.s32.totalorder %s15, 3
      %p78 = por %p76, %p77
      %p80 = scmp.ne.s32.totalorder %s63, %s79
      %p81 = scmp.eq.s32.totalorder %s15, 0
      %p82 = por %p80, %p81
      %s84 = sadd.s32 %s83, 1
      %p87 = scmp.eq.s32.totalorder %s9, 3
      %p88 = scmp.ne.s32.totalorder %s83, %s85
      %p89 = scmp.eq.s32.totalorder %s9, 0
      %p90 = por %p88, %p89
      %p91 = scmp.ne.s32.totalorder %s83, %s85
      %p92 = scmp.eq.s32.totalorder %s14, 3
      %p93 = por %p91, %p92
      %p94 = scmp.ne.s32.totalorder %s85, %s86
      %p95 = scmp.eq.s32.totalorder %s14, 0
      %p96 = por %p94, %p95
      %p97 = scmp.ne.s32.totalorder %s85, %s86
      %p98 = scmp.eq.s32.totalorder %s15, 3
      %p99 = por %p97, %p98
      %p101 = scmp.ne.s32.totalorder %s86, %s100
      %p102 = scmp.eq.s32.totalorder %s15, 0
      %p103 = por %p101, %p102
      %s104 = ssub.s32 %s16, %s28
      %p105 = scmp.eq.s32.totalorder %s104, 0
      %s107 = sadd.s32 %s106, 1
      %s108 = scalar_select %p105, %s106, %s107
      %p111 = pneg %p105
      %p112 = scmp.eq.s32.totalorder %s9, 3
      %p113 = por %p111, %p112
      %p114 = scmp.ne.s32.totalorder %s106, %s109
      %p115 = scmp.eq.s32.totalorder %s9, 0
      %p116 = por %p114, %p115
      %p117 = scmp.ne.s32.totalorder %s106, %s109
      %p118 = scmp.eq.s32.totalorder %s14, 3
      %p119 = por %p117, %p118
      %p120 = scmp.ne.s32.totalorder %s109, %s110
      %p121 = scmp.eq.s32.totalorder %s14, 0
      %p122 = por %p120, %p121
      %p123 = scmp.ne.s32.totalorder %s109, %s110
      %p124 = scmp.eq.s32.totalorder %s15, 3
      %p125 = por %p123, %p124
      %p127 = scmp.ne.s32.totalorder %s110, %s126
      %p128 = scmp.eq.s32.totalorder %s15, 0
      %p129 = por %p127, %p128
      %p130 = scmp.le.s32.totalorder 1, %s9
      %p131 = scmp.lt.s32.totalorder %s9, 5
      %p132 = pnand %p130, %p131
      %p133 = pneg %p132
      // Predicated region
      $region9: #{gcn_conv_model_forward.2} parent=5 // pred_check
        _
      $region10: #{gcn_conv_model_forward.2} parent=5 // pred_check_branch
        %135 = sbr.rel (%p132) target = $region12
      $region11: #{gcn_conv_model_forward.2} parent=5 // pred_region
        %s136 = ssub.s32 %s9, 1
        // Predicated region
        $region13: #{gcn_conv_model_forward.2} parent=11 // pred_check
          %p137 = pneg %p96
        $region14: #{gcn_conv_model_forward.2} parent=11 // pred_check_branch
          %139 = sbr.rel (%p137) target = $region16
        $region15: #{gcn_conv_model_forward.2} parent=11 // pred_region
          _
        $region16: #{gcn_conv_model_forward.2} parent=11 // pred_fallthru
          _
      $region12: #{gcn_conv_model_forward.2} parent=5 // pred_fallthru
        _
      %p140 = scmp.lt.s32.totalorder %s9, 4
      // Predicated region
      $region17: #{gcn_conv_model_forward.2} parent=5 // pred_check
        %p141 = pneg %p140
      $region18: #{gcn_conv_model_forward.2} parent=5 // pred_check_branch
        %143 = sbr.rel (%p141) target = $region20
      $region19: #{gcn_conv_model_forward.2} parent=5 // pred_region
        // Predicated region
        $region21: #{gcn_conv_model_forward.2} parent=19 // pred_check
          %p144 = pneg %p43
        $region22: #{gcn_conv_model_forward.2} parent=19 // pred_check_branch
          %146 = sbr.rel (%p144) target = $region24
        $region23: #{gcn_conv_model_forward.2} parent=19 // pred_region
          %s147 = sand.u32 %s33, 1
          %s148 = sand.u32 %s33, 1
          %s149 = smul.addr %s148, 64
          %s150 = scalar_lea.vmem [#allocation3], %s149
          %s151 = smul.u32 16, %s16
          %s152 = smul.addr %s151, 2
          %s153 = sadd.s32 %s17, %s152
          %s154 = smul.addr %s153, 4
          %s155 = scalar_lea.vmem %s0, %s154
          // Predicated region
          $region25: #{gcn_conv_model_forward.2} parent=23 // pred_check
            _
          $region26: #{gcn_conv_model_forward.2} parent=23 // pred_check_branch
            %157 = sbr.rel (0) target = $region28
          $region27: #{gcn_conv_model_forward.2} parent=23 // pred_region
            // Predicated region
            $region29: #{gcn_conv_model_forward.2} parent=27 // pred_check
              _
            $region30: #{gcn_conv_model_forward.2} parent=27 // pred_check_branch
              %159 = sbr.rel target = $region32
            $region31: #{gcn_conv_model_forward.2} parent=27 // pred_region
              // Predicated region
              $region44: #{gcn_conv_model_forward.2} parent=31 // pred_check
                _
              $region45: #{gcn_conv_model_forward.2} parent=31 // pred_check_branch
                %204 = sbr.rel (0) target = $region47
              $region46: #{gcn_conv_model_forward.2} parent=31 // pred_region
                loop: start=0, step=1, limit=1
                $region48: #{gcn_conv_model_forward.2} parent=46 // loop_pre_header
                  _
                $region49: #{gcn_conv_model_forward.2} parent=46 // loop_header
                  %s206 = sphi 0, %s210
                  %p207 = scmp.ge.s32.totalorder %s206, 1
                  %s211 = sphi %s155, %s155
                  %s212 = sphi %s150, %s150
                $region50: #{gcn_conv_model_forward.2} parent=46 // loop_header_branch
                  %209 = sbr.rel (%p207) target = $region54
                $region51: #{gcn_conv_model_forward.2} parent=46 // loop_body
                  _
                $region52: #{gcn_conv_model_forward.2} parent=46 // loop_footer
                  %s210 = sadd.s32 1, %s206
                $region53: #{gcn_conv_model_forward.2} parent=46 // loop_footer_branch
                  %205 = sbr.rel target = $region49
                $region54: #{gcn_conv_model_forward.2} parent=46 // loop_exit
                  _
                loop: start=0, step=1, limit=1
                $region55: #{gcn_conv_model_forward.2} parent=46 // loop_pre_header
                  _
                $region56: #{gcn_conv_model_forward.2} parent=46 // loop_header
                  %s215 = sphi 0, %s219
                  %p216 = scmp.ge.s32.totalorder %s215, 1
                  %s220 = sphi %s155, %s155
                  %s221 = sphi %s150, %s150
                $region57: #{gcn_conv_model_forward.2} parent=46 // loop_header_branch
                  %218 = sbr.rel (%p216) target = $region61
                $region58: #{gcn_conv_model_forward.2} parent=46 // loop_body
                  %v222 = vld [vmem:[%s220] sm:$0xf]
                  %223 = vst [vmem:[%s221] sm:$0xf] %v222
                  %v224 = vld [vmem:[%s220 + $0x8] sm:$0xf]
                  %225 = vst [vmem:[%s221 + $0x4] sm:$0xf] %v224
                  %v226 = vld [vmem:[%s220 + $0x10] sm:$0xf]
                  %227 = vst [vmem:[%s221 + $0x8] sm:$0xf] %v226
                  %v228 = vld [vmem:[%s220 + $0x18] sm:$0xf]
                  %229 = vst [vmem:[%s221 + $0xc] sm:$0xf] %v228
                  %v230 = vld [vmem:[%s220 + $0x20] sm:$0xf]
                  %231 = vst [vmem:[%s221 + $0x10] sm:$0xf] %v230
                  %v232 = vld [vmem:[%s220 + $0x28] sm:$0xf]
                  %233 = vst [vmem:[%s221 + $0x14] sm:$0xf] %v232
                  %v234 = vld [vmem:[%s220 + $0x30] sm:$0xf]
                  %235 = vst [vmem:[%s221 + $0x18] sm:$0xf] %v234
                  %v236 = vld [vmem:[%s220 + $0x38] sm:$0xf]
                  %237 = vst [vmem:[%s221 + $0x1c] sm:$0xf] %v236
                  %v238 = vld [vmem:[%s220 + $0x40] sm:$0xf]
                  %239 = vst [vmem:[%s221 + $0x20] sm:$0xf] %v238
                  %v240 = vld [vmem:[%s220 + $0x48] sm:$0xf]
                  %241 = vst [vmem:[%s221 + $0x24] sm:$0xf] %v240
                  %v242 = vld [vmem:[%s220 + $0x50] sm:$0xf]
                  %243 = vst [vmem:[%s221 + $0x28] sm:$0xf] %v242
                  %v244 = vld [vmem:[%s220 + $0x58] sm:$0xf]
                  %245 = vst [vmem:[%s221 + $0x2c] sm:$0xf] %v244
                  %v246 = vld [vmem:[%s220 + $0x60] sm:$0xf]
                  %247 = vst [vmem:[%s221 + $0x30] sm:$0xf] %v246
                  %v248 = vld [vmem:[%s220 + $0x68] sm:$0xf]
                  %249 = vst [vmem:[%s221 + $0x34] sm:$0xf] %v248
                  %v250 = vld [vmem:[%s220 + $0x70] sm:$0xf]
                  %251 = vst [vmem:[%s221 + $0x38] sm:$0xf] %v250
                  %v252 = vld [vmem:[%s220 + $0x78] sm:$0xf]
                  %253 = vst [vmem:[%s221 + $0x3c] sm:$0xf] %v252
                $region59: #{gcn_conv_model_forward.2} parent=46 // loop_footer
                  %s219 = sadd.s32 1, %s215
                $region60: #{gcn_conv_model_forward.2} parent=46 // loop_footer_branch
                  %214 = sbr.rel target = $region56
                $region61: #{gcn_conv_model_forward.2} parent=46 // loop_exit
                  _
              $region47: #{gcn_conv_model_forward.2} parent=31 // pred_fallthru
                _
            $region32: #{gcn_conv_model_forward.2} parent=27 // pred_fallthru
              _
            // Predicated region
            $region33: #{gcn_conv_model_forward.2} parent=27 // pred_check
              _
            $region34: #{gcn_conv_model_forward.2} parent=27 // pred_check_branch
              %161 = sbr.rel (0) target = $region36
            $region35: #{gcn_conv_model_forward.2} parent=27 // pred_region
              loop: start=0, step=1, limit=1
              $region37: #{gcn_conv_model_forward.2} parent=35 // loop_pre_header
                _
              $region38: #{gcn_conv_model_forward.2} parent=35 // loop_header
                %s164 = sphi 0, %s168
                %p165 = scmp.ge.s32.totalorder %s164, 1
                %s169 = sphi %s155, %s155
                %s170 = sphi %s150, %s150
              $region39: #{gcn_conv_model_forward.2} parent=35 // loop_header_branch
                %167 = sbr.rel (%p165) target = $region43
              $region40: #{gcn_conv_model_forward.2} parent=35 // loop_body
                %v171 = vld [vmem:[%s169] sm:$0xf]
                %172 = vst [vmem:[%s170] sm:$0xf] %v171
                %v173 = vld [vmem:[%s169 + $0x8] sm:$0xf]
                %174 = vst [vmem:[%s170 + $0x4] sm:$0xf] %v173
                %v175 = vld [vmem:[%s169 + $0x10] sm:$0xf]
                %176 = vst [vmem:[%s170 + $0x8] sm:$0xf] %v175
                %v177 = vld [vmem:[%s169 + $0x18] sm:$0xf]
                %178 = vst [vmem:[%s170 + $0xc] sm:$0xf] %v177
                %v179 = vld [vmem:[%s169 + $0x20] sm:$0xf]
                %180 = vst [vmem:[%s170 + $0x10] sm:$0xf] %v179
                %v181 = vld [vmem:[%s169 + $0x28] sm:$0xf]
                %182 = vst [vmem:[%s170 + $0x14] sm:$0xf] %v181
                %v183 = vld [vmem:[%s169 + $0x30] sm:$0xf]
                %184 = vst [vmem:[%s170 + $0x18] sm:$0xf] %v183
                %v185 = vld [vmem:[%s169 + $0x38] sm:$0xf]
                %186 = vst [vmem:[%s170 + $0x1c] sm:$0xf] %v185
                %v187 = vld [vmem:[%s169 + $0x40] sm:$0xf]
                %188 = vst [vmem:[%s170 + $0x20] sm:$0xf] %v187
                %v189 = vld [vmem:[%s169 + $0x48] sm:$0xf]
                %190 = vst [vmem:[%s170 + $0x24] sm:$0xf] %v189
                %v191 = vld [vmem:[%s169 + $0x50] sm:$0xf]
                %192 = vst [vmem:[%s170 + $0x28] sm:$0xf] %v191
                %v193 = vld [vmem:[%s169 + $0x58] sm:$0xf]
                %194 = vst [vmem:[%s170 + $0x2c] sm:$0xf] %v193
                %v195 = vld [vmem:[%s169 + $0x60] sm:$0xf]
                %196 = vst [vmem:[%s170 + $0x30] sm:$0xf] %v195
                %v197 = vld [vmem:[%s169 + $0x68] sm:$0xf]
                %198 = vst [vmem:[%s170 + $0x34] sm:$0xf] %v197
                %v199 = vld [vmem:[%s169 + $0x70] sm:$0xf]
                %200 = vst [vmem:[%s170 + $0x38] sm:$0xf] %v199
                %v201 = vld [vmem:[%s169 + $0x78] sm:$0xf]
                %202 = vst [vmem:[%s170 + $0x3c] sm:$0xf] %v201
              $region41: #{gcn_conv_model_forward.2} parent=35 // loop_footer
                %s168 = sadd.s32 1, %s164
              $region42: #{gcn_conv_model_forward.2} parent=35 // loop_footer_branch
                %163 = sbr.rel target = $region38
              $region43: #{gcn_conv_model_forward.2} parent=35 // loop_exit
                _
            $region36: #{gcn_conv_model_forward.2} parent=27 // pred_fallthru
              _
          $region28: #{gcn_conv_model_forward.2} parent=23 // pred_fallthru
            _
          %254 = vnop
        $region24: #{gcn_conv_model_forward.2} parent=19 // pred_fallthru
          _
        // Predicated region
        $region62: #{gcn_conv_model_forward.2} parent=19 // pred_check
          %p255 = pneg %p69
        $region63: #{gcn_conv_model_forward.2} parent=19 // pred_check_branch
          %257 = sbr.rel (%p255) target = $region65
        $region64: #{gcn_conv_model_forward.2} parent=19 // pred_region
          %s258 = smul.u32 16, %s17
          %p259 = scmp.lt.s32.totalorder %s258, 31
          %s260 = scalar_select %p259, %s258, 31
          %s261 = smul.addr %s260, 4
          %s262 = scalar_lea.vmem %s1, %s261
          %s263 = smul.u32 16, %s17
        $region65: #{gcn_conv_model_forward.2} parent=19 // pred_fallthru
          _
      $region20: #{gcn_conv_model_forward.2} parent=5 // pred_fallthru
        _
      %p264 = scmp.le.s32.totalorder 1, %s9
      %p265 = scmp.lt.s32.totalorder %s9, 5
      %p266 = pnand %p264, %p265
      %p267 = pneg %p266
      // Predicated region
      $region66: #{gcn_conv_model_forward.2} parent=5 // pred_check
        _
      $region67: #{gcn_conv_model_forward.2} parent=5 // pred_check_branch
        %269 = sbr.rel (%p266) target = $region69
      $region68: #{gcn_conv_model_forward.2} parent=5 // pred_region
        %s270 = ssub.s32 %s9, 1
        %s271 = sand.u32 %s36, 1
        %s272 = sand.u32 %s36, 1
        %s273 = smul.addr %s272, 64
        %s274 = scalar_lea.vmem [#allocation3], %s273
        // Predicated region
        $region70: #{gcn_conv_model_forward.2} parent=68 // pred_check
          %p275 = pneg %p49
        $region71: #{gcn_conv_model_forward.2} parent=68 // pred_check_branch
          %277 = sbr.rel (%p275) target = $region73
        $region72: #{gcn_conv_model_forward.2} parent=68 // pred_region
          _
        $region73: #{gcn_conv_model_forward.2} parent=68 // pred_fallthru
          _
        %s278 = sand.u32 %s36, 1
        %s279 = sand.u32 %s36, 1
        %s280 = smul.addr %s279, 64
        %s281 = scalar_lea.vmem [#allocation3], %s280
        %p282 = pneg %p49
        %p283 = pneg %p46
        %s284 = smul.u32 16, %s19
        %p285 = scmp.lt.s32.totalorder %s284, 31
        %s286 = scalar_select %p285, %s284, 31
        %s287 = smul.addr %s286, 4
        %s288 = scalar_lea.vmem %s1, %s287
        %p289 = pneg %p75
        %p290 = pneg %p72
        %p291 = pneg %p96
        %p292 = pneg %p93
        %p293 = pneg %p122
        %p294 = pneg %p119
        %s295 = smul.u32 8, %s18
        %p296 = scmp.lt.s32.totalorder %s295, 15
        %s297 = scalar_select %p296, %s295, 15
        %s298 = smul.addr %s297, 8
        %s299 = scalar_lea.vmem %s3, %s298
        %s300 = smul.u32 16, %s18
        %s301 = smul.u32 16, %s19
        %p302 = scmp.lt.s32.totalorder %s301, 31
        %s303 = scalar_select %p302, %s301, 31
        %s304 = smul.addr %s303, 4
        %s305 = scalar_lea.vmem %s1, %s304
        %s306 = smul.u32 16, %s19
        %s307 = smul.u32 8, %s18
        %p308 = scmp.lt.s32.totalorder %s307, 15
        %s309 = scalar_select %p308, %s307, 15
        %s310 = smul.addr %s309, 8
        %s311 = scalar_lea.vmem %s3, %s310
        %s312 = smul.u32 8, %s18
        %p314 = scmp.eq.s32.totalorder %s19, 0
        // Predicated region
        $region74: #{gcn_conv_model_forward.2} parent=68 // pred_check
          %p315 = pneg %p314
        $region75: #{gcn_conv_model_forward.2} parent=68 // pred_check_branch
          %317 = sbr.rel (%p315) target = $region77
        $region76: #{gcn_conv_model_forward.2} parent=68 // pred_region
          %318 = vst [vmem:[#allocation2] sm:$0xff] 0.0
          %319 = vst [vmem:[#allocation2 + $0x8] sm:$0xff] 0.0
          %320 = vst [vmem:[#allocation2 + $0x10] sm:$0xff] 0.0
          %321 = vst [vmem:[#allocation2 + $0x18] sm:$0xff] 0.0
          %322 = vst [vmem:[#allocation2 + $0x20] sm:$0xff] 0.0
          %323 = vst [vmem:[#allocation2 + $0x28] sm:$0xff] 0.0
          %324 = vst [vmem:[#allocation2 + $0x30] sm:$0xff] 0.0
          %325 = vst [vmem:[#allocation2 + $0x38] sm:$0xff] 0.0
          %326 = vst [vmem:[#allocation2 + $0x40] sm:$0xff] 0.0
          %327 = vst [vmem:[#allocation2 + $0x48] sm:$0xff] 0.0
          %328 = vst [vmem:[#allocation2 + $0x50] sm:$0xff] 0.0
          %329 = vst [vmem:[#allocation2 + $0x58] sm:$0xff] 0.0
          %330 = vst [vmem:[#allocation2 + $0x60] sm:$0xff] 0.0
          %331 = vst [vmem:[#allocation2 + $0x68] sm:$0xff] 0.0
          %332 = vst [vmem:[#allocation2 + $0x70] sm:$0xff] 0.0
          %333 = vst [vmem:[#allocation2 + $0x78] sm:$0xff] 0.0
        $region77: #{gcn_conv_model_forward.2} parent=68 // pred_fallthru
          _
        %v334 = vld [vmem:[#allocation2] sm:$0xff]
        %v335 = vld [vmem:[#allocation2 + $0x8] sm:$0xff]
        %v336 = vld [vmem:[#allocation2 + $0x10] sm:$0xff]
        %v337 = vld [vmem:[#allocation2 + $0x18] sm:$0xff]
        %v338 = vld [vmem:[#allocation2 + $0x20] sm:$0xff]
        %v339 = vld [vmem:[#allocation2 + $0x28] sm:$0xff]
        %v340 = vld [vmem:[#allocation2 + $0x30] sm:$0xff]
        %v341 = vld [vmem:[#allocation2 + $0x38] sm:$0xff]
        %v342 = vld [vmem:[#allocation2 + $0x40] sm:$0xff]
        %v343 = vld [vmem:[#allocation2 + $0x48] sm:$0xff]
        %v344 = vld [vmem:[#allocation2 + $0x50] sm:$0xff]
        %v345 = vld [vmem:[#allocation2 + $0x58] sm:$0xff]
        %v346 = vld [vmem:[#allocation2 + $0x60] sm:$0xff]
        %v347 = vld [vmem:[#allocation2 + $0x68] sm:$0xff]
        %v348 = vld [vmem:[#allocation2 + $0x70] sm:$0xff]
        %v349 = vld [vmem:[#allocation2 + $0x78] sm:$0xff]
        %v350 = vld [vmem:[%s274] sm:$0xf]
        %v351 = vld [vmem:[%s274 + $0x4] sm:$0xf]
        %v352 = vld [vmem:[%s274 + $0x8] sm:$0xf]
        %v353 = vld [vmem:[%s274 + $0xc] sm:$0xf]
        %v354 = vld [vmem:[%s274 + $0x10] sm:$0xf]
        %v355 = vld [vmem:[%s274 + $0x14] sm:$0xf]
        %v356 = vld [vmem:[%s274 + $0x18] sm:$0xf]
        %v357 = vld [vmem:[%s274 + $0x1c] sm:$0xf]
        %v358 = vld [vmem:[%s274 + $0x20] sm:$0xf]
        %v359 = vld [vmem:[%s274 + $0x24] sm:$0xf]
        %v360 = vld [vmem:[%s274 + $0x28] sm:$0xf]
        %v361 = vld [vmem:[%s274 + $0x2c] sm:$0xf]
        %v362 = vld [vmem:[%s274 + $0x30] sm:$0xf]
        %v363 = vld [vmem:[%s274 + $0x34] sm:$0xf]
        %v364 = vld [vmem:[%s274 + $0x38] sm:$0xf]
        %v365 = vld [vmem:[%s274 + $0x3c] sm:$0xf]
        %v366 = vld [vmem:[%s305] sm:$0xf]
        %v367 = vld [vmem:[%s305 + $0x4] sm:$0xf]
        %v368 = vld [vmem:[%s305 + $0x8] sm:$0xf]
        %v369 = vld [vmem:[%s305 + $0xc] sm:$0xf]
        %v370 = vld [vmem:[%s305 + $0x10] sm:$0xf]
        %v371 = vld [vmem:[%s305 + $0x14] sm:$0xf]
        %v372 = vld [vmem:[%s305 + $0x18] sm:$0xf]
        %v373 = vld [vmem:[%s305 + $0x1c] sm:$0xf]
        %v374 = vld [vmem:[%s305 + $0x20] sm:$0xf]
        %v375 = vld [vmem:[%s305 + $0x24] sm:$0xf]
        %v376 = vld [vmem:[%s305 + $0x28] sm:$0xf]
        %v377 = vld [vmem:[%s305 + $0x2c] sm:$0xf]
        %v378 = vld [vmem:[%s305 + $0x30] sm:$0xf]
        %v379 = vld [vmem:[%s305 + $0x34] sm:$0xf]
        %v380 = vld [vmem:[%s305 + $0x38] sm:$0xf]
        %v381 = vld [vmem:[%s305 + $0x3c] sm:$0xf]
        %v398 = vunpack.c.l.b16 %v350
        %v399 = vunpack.c.l.b16 %v351
        %v400 = vunpack.c.l.b16 %v352
        %v401 = vunpack.c.l.b16 %v353
        %v402 = vunpack.c.l.b16 %v354
        %v403 = vunpack.c.l.b16 %v355
        %v404 = vunpack.c.l.b16 %v356
        %v405 = vunpack.c.l.b16 %v357
        %v406 = vunpack.c.l.b16 %v358
        %v407 = vunpack.c.l.b16 %v359
        %v408 = vunpack.c.l.b16 %v360
        %v409 = vunpack.c.l.b16 %v361
        %v410 = vunpack.c.l.b16 %v362
        %v411 = vunpack.c.l.b16 %v363
        %v412 = vunpack.c.l.b16 %v364
        %v413 = vunpack.c.l.b16 %v365
        %v414 = vpack.c.b16 %v399, %v398
        %v415 = vpack.c.b16 %v401, %v400
        %v416 = vpack.c.b16 %v403, %v402
        %v417 = vpack.c.b16 %v405, %v404
        %v418 = vpack.c.b16 %v407, %v406
        %v419 = vpack.c.b16 %v409, %v408
        %v420 = vpack.c.b16 %v411, %v410
        %v421 = vpack.c.b16 %v413, %v412
        %v446 = vunpack.c.l.b16 %v366
        %v447 = vunpack.c.l.b16 %v367
        %v448 = vunpack.c.l.b16 %v368
        %v449 = vunpack.c.l.b16 %v369
        %v450 = vunpack.c.l.b16 %v370
        %v451 = vunpack.c.l.b16 %v371
        %v452 = vunpack.c.l.b16 %v372
        %v453 = vunpack.c.l.b16 %v373
        %v454 = vunpack.c.l.b16 %v374
        %v455 = vunpack.c.l.b16 %v375
        %v456 = vunpack.c.l.b16 %v376
        %v457 = vunpack.c.l.b16 %v377
        %v458 = vunpack.c.l.b16 %v378
        %v459 = vunpack.c.l.b16 %v379
        %v460 = vunpack.c.l.b16 %v380
        %v461 = vunpack.c.l.b16 %v381
        %v462 = vpack.c.b16 %v447, %v446
        %v463 = vpack.c.b16 %v449, %v448
        %v464 = vpack.c.b16 %v451, %v450
        %v465 = vpack.c.b16 %v453, %v452
        %v466 = vpack.c.b16 %v455, %v454
        %v467 = vpack.c.b16 %v457, %v456
        %v468 = vpack.c.b16 %v459, %v458
        %v469 = vpack.c.b16 %v461, %v460
        %478 = vmatprep.subr.bf16.mxu0 0
        %479 = vmatpush1.bf16.msra.mxu0 %v462
        %480 = vmatprep.subr.bf16.mxu0 0
        %481 = vmatpush1.bf16.msra.mxu0 %v463
        %482 = vmatprep.subr.bf16.mxu0 0
        %483 = vmatpush1.bf16.msra.mxu0 %v464
        %484 = vmatprep.subr.bf16.mxu0 0
        %485 = vmatpush1.bf16.msra.mxu0 %v465
        %486 = vmatprep.subr.bf16.mxu0 0
        %487 = vmatpush1.bf16.msra.mxu0 %v466
        %488 = vmatprep.subr.bf16.mxu0 0
        %489 = vmatpush1.bf16.msra.mxu0 %v467
        %490 = vmatprep.subr.bf16.mxu0 0
        %491 = vmatpush1.bf16.msra.mxu0 %v468
        %492 = vmatprep.subr.bf16.mxu0 0
        %493 = vmatpush1.bf16.msra.mxu0 %v469
        %494 = vmatprep.subr.bf16.mxu0 0
        %495 = vmatpush1.bf16.msra.mxu0 0
        %496 = vmatprep.subr.bf16.mxu0 0
        %497 = vmatpush1.bf16.msra.mxu0 0
        %498 = vmatprep.subr.bf16.mxu0 0
        %499 = vmatpush1.bf16.msra.mxu0 0
        %500 = vmatprep.subr.bf16.mxu0 0
        %501 = vmatpush1.bf16.msra.mxu0 0
        %502 = vmatprep.subr.bf16.mxu0 0
        %503 = vmatpush1.bf16.msra.mxu0 0
        %504 = vmatprep.subr.bf16.mxu0 0
        %505 = vmatpush1.bf16.msra.mxu0 0
        %506 = vmatprep.subr.bf16.mxu0 0
        %507 = vmatpush1.bf16.msra.mxu0 0
        %508 = vmatprep.subr.bf16.mxu0 0
        %509 = vmatpush1.bf16.msra.mxu0 0
        %510 = vmatprep.mubr.bf16.mxu0 0
        %511 = vmatmul.mubr.bf16.gmra.mrb[0].mxu0 %v414
        %v512 = vpop.f32.mrb[0].mxu0
        %v513 = vadd.f32 0.0, %v512
        %v514 = vpop.f32.mrb[0].mxu0
        %v515 = vpop.f32.mrb[0].mxu0
        %v516 = vadd.f32 0.0, %v515
        %v517 = vpop.f32.mrb[0].mxu0
        %518 = vmatprep.mubr.bf16.mxu0 0
        %519 = vmatmul.mubr.bf16.gmra.mrb[0].mxu0 %v415
        %v520 = vpop.f32.mrb[0].mxu0
        %v521 = vadd.f32 0.0, %v520
        %v522 = vpop.f32.mrb[0].mxu0
        %v523 = vpop.f32.mrb[0].mxu0
        %v524 = vadd.f32 0.0, %v523
        %v525 = vpop.f32.mrb[0].mxu0
        %526 = vmatprep.mubr.bf16.mxu0 0
        %527 = vmatmul.mubr.bf16.gmra.mrb[0].mxu0 %v416
        %v528 = vpop.f32.mrb[0].mxu0
        %v529 = vadd.f32 0.0, %v528
        %v530 = vpop.f32.mrb[0].mxu0
        %v531 = vpop.f32.mrb[0].mxu0
        %v532 = vadd.f32 0.0, %v531
        %v533 = vpop.f32.mrb[0].mxu0
        %534 = vmatprep.mubr.bf16.mxu0 0
        %535 = vmatmul.mubr.bf16.gmra.mrb[0].mxu0 %v417
        %v536 = vpop.f32.mrb[0].mxu0
        %v537 = vadd.f32 0.0, %v536
        %v538 = vpop.f32.mrb[0].mxu0
        %v539 = vpop.f32.mrb[0].mxu0
        %v540 = vadd.f32 0.0, %v539
        %v541 = vpop.f32.mrb[0].mxu0
        %542 = vmatprep.mubr.bf16.mxu0 0
        %543 = vmatmul.mubr.bf16.gmra.mrb[0].mxu0 %v418
        %v544 = vpop.f32.mrb[0].mxu0
        %v545 = vadd.f32 0.0, %v544
        %v546 = vpop.f32.mrb[0].mxu0
        %v547 = vpop.f32.mrb[0].mxu0
        %v548 = vadd.f32 0.0, %v547
        %v549 = vpop.f32.mrb[0].mxu0
        %550 = vmatprep.mubr.bf16.mxu0 0
        %551 = vmatmul.mubr.bf16.gmra.mrb[0].mxu0 %v419
        %v552 = vpop.f32.mrb[0].mxu0
        %v553 = vadd.f32 0.0, %v552
        %v554 = vpop.f32.mrb[0].mxu0
        %v555 = vpop.f32.mrb[0].mxu0
        %v556 = vadd.f32 0.0, %v555
        %v557 = vpop.f32.mrb[0].mxu0
        %558 = vmatprep.mubr.bf16.mxu0 0
        %559 = vmatmul.mubr.bf16.gmra.mrb[0].mxu0 %v420
        %v560 = vpop.f32.mrb[0].mxu0
        %v561 = vadd.f32 0.0, %v560
        %v562 = vpop.f32.mrb[0].mxu0
        %v563 = vpop.f32.mrb[0].mxu0
        %v564 = vadd.f32 0.0, %v563
        %v565 = vpop.f32.mrb[0].mxu0
        %566 = vmatprep.mubr.bf16.mxu0 0
        %567 = vmatmul.mubr.bf16.gmra.mrb[0].mxu0 %v421
        %v568 = vpop.f32.mrb[0].mxu0
        %v569 = vadd.f32 0.0, %v568
        %v570 = vpop.f32.mrb[0].mxu0
        %v571 = vpop.f32.mrb[0].mxu0
        %v572 = vadd.f32 0.0, %v571
        %v573 = vpop.f32.mrb[0].mxu0
        %574 = vdwg.mxu0
        %v575 = vadd.f32 %v334, %v513
        %v576 = vadd.f32 %v335, %v516
        %v577 = vadd.f32 %v336, %v521
        %v578 = vadd.f32 %v337, %v524
        %v579 = vadd.f32 %v338, %v529
        %v580 = vadd.f32 %v339, %v532
        %v581 = vadd.f32 %v340, %v537
        %v582 = vadd.f32 %v341, %v540
        %v583 = vadd.f32 %v342, %v545
        %v584 = vadd.f32 %v343, %v548
        %v585 = vadd.f32 %v344, %v553
        %v586 = vadd.f32 %v345, %v556
        %v587 = vadd.f32 %v346, %v561
        %v588 = vadd.f32 %v347, %v564
        %v589 = vadd.f32 %v348, %v569
        %v590 = vadd.f32 %v349, %v572
        %591 = vst [vmem:[#allocation2] sm:$0xff] %v575
        %592 = vst [vmem:[#allocation2 + $0x8] sm:$0xff] %v576
        %593 = vst [vmem:[#allocation2 + $0x10] sm:$0xff] %v577
        %594 = vst [vmem:[#allocation2 + $0x18] sm:$0xff] %v578
        %595 = vst [vmem:[#allocation2 + $0x20] sm:$0xff] %v579
        %596 = vst [vmem:[#allocation2 + $0x28] sm:$0xff] %v580
        %597 = vst [vmem:[#allocation2 + $0x30] sm:$0xff] %v581
        %598 = vst [vmem:[#allocation2 + $0x38] sm:$0xff] %v582
        %599 = vst [vmem:[#allocation2 + $0x40] sm:$0xff] %v583
        %600 = vst [vmem:[#allocation2 + $0x48] sm:$0xff] %v584
        %601 = vst [vmem:[#allocation2 + $0x50] sm:$0xff] %v585
        %602 = vst [vmem:[#allocation2 + $0x58] sm:$0xff] %v586
        %603 = vst [vmem:[#allocation2 + $0x60] sm:$0xff] %v587
        %604 = vst [vmem:[#allocation2 + $0x68] sm:$0xff] %v588
        %605 = vst [vmem:[#allocation2 + $0x70] sm:$0xff] %v589
        %606 = vst [vmem:[#allocation2 + $0x78] sm:$0xff] %v590
        %p607 = scmp.eq.s32.totalorder %s19, 1
        // Predicated region
        $region78: #{gcn_conv_model_forward.2} parent=68 // pred_check
          %p608 = pneg %p607
        $region79: #{gcn_conv_model_forward.2} parent=68 // pred_check_branch
          %610 = sbr.rel (%p608) target = $region81
        $region80: #{gcn_conv_model_forward.2} parent=68 // pred_region
          %v611 = vld [vmem:[#allocation2] sm:$0xff]
          %v612 = vld [vmem:[#allocation2 + $0x8] sm:$0xff]
          %v613 = vld [vmem:[#allocation2 + $0x10] sm:$0xff]
          %v614 = vld [vmem:[#allocation2 + $0x18] sm:$0xff]
          %v615 = vld [vmem:[#allocation2 + $0x20] sm:$0xff]
          %v616 = vld [vmem:[#allocation2 + $0x28] sm:$0xff]
          %v617 = vld [vmem:[#allocation2 + $0x30] sm:$0xff]
          %v618 = vld [vmem:[#allocation2 + $0x38] sm:$0xff]
          %v619 = vld [vmem:[#allocation2 + $0x40] sm:$0xff]
          %v620 = vld [vmem:[#allocation2 + $0x48] sm:$0xff]
          %v621 = vld [vmem:[#allocation2 + $0x50] sm:$0xff]
          %v622 = vld [vmem:[#allocation2 + $0x58] sm:$0xff]
          %v623 = vld [vmem:[#allocation2 + $0x60] sm:$0xff]
          %v624 = vld [vmem:[#allocation2 + $0x68] sm:$0xff]
          %v625 = vld [vmem:[#allocation2 + $0x70] sm:$0xff]
          %v626 = vld [vmem:[#allocation2 + $0x78] sm:$0xff]
          %v627 = vld [vmem:[%s2] sm:$0x1]
          %v629 = vlaneseq
          %v630 = vshrl.u32 %v629, 7
          %v631 = vsub.s32 0, %v630
          %v632 = vrot.slane %v627, %v631
          %v634 = vadd.f32 %v611, %v632
          %v635 = vadd.f32 %v612, %v632
          %v636 = vadd.f32 %v613, %v632
          %v637 = vadd.f32 %v614, %v632
          %v638 = vadd.f32 %v615, %v632
          %v639 = vadd.f32 %v616, %v632
          %v640 = vadd.f32 %v617, %v632
          %v641 = vadd.f32 %v618, %v632
          %v642 = vadd.f32 %v619, %v632
          %v643 = vadd.f32 %v620, %v632
          %v644 = vadd.f32 %v621, %v632
          %v645 = vadd.f32 %v622, %v632
          %v646 = vadd.f32 %v623, %v632
          %v647 = vadd.f32 %v624, %v632
          %v648 = vadd.f32 %v625, %v632
          %v649 = vadd.f32 %v626, %v632
          %v650 = vmax.f32 %v634, 0.0
          %v651 = vmax.f32 %v635, 0.0
          %v652 = vmax.f32 %v636, 0.0
          %v653 = vmax.f32 %v637, 0.0
          %v654 = vmax.f32 %v638, 0.0
          %v655 = vmax.f32 %v639, 0.0
          %v656 = vmax.f32 %v640, 0.0
          %v657 = vmax.f32 %v641, 0.0
          %v658 = vmax.f32 %v642, 0.0
          %v659 = vmax.f32 %v643, 0.0
          %v660 = vmax.f32 %v644, 0.0
          %v661 = vmax.f32 %v645, 0.0
          %v662 = vmax.f32 %v646, 0.0
          %v663 = vmax.f32 %v647, 0.0
          %v664 = vmax.f32 %v648, 0.0
          %v665 = vmax.f32 %v649, 0.0
          %v666 = vpack.c.bf16 %v651, %v650
          %v667 = vpack.c.bf16 %v653, %v652
          %v668 = vpack.c.bf16 %v655, %v654
          %v669 = vpack.c.bf16 %v657, %v656
          %v670 = vpack.c.bf16 %v659, %v658
          %v671 = vpack.c.bf16 %v661, %v660
          %v672 = vpack.c.bf16 %v663, %v662
          %v673 = vpack.c.bf16 %v665, %v664
          %674 = vst [vmem:[%s311] sm:$0xff] %v666
          %675 = vst [vmem:[%s311 + $0x8] sm:$0xff] %v667
          %676 = vst [vmem:[%s311 + $0x10] sm:$0xff] %v668
          %677 = vst [vmem:[%s311 + $0x18] sm:$0xff] %v669
          %678 = vst [vmem:[%s311 + $0x20] sm:$0xff] %v670
          %679 = vst [vmem:[%s311 + $0x28] sm:$0xff] %v671
          %680 = vst [vmem:[%s311 + $0x30] sm:$0xff] %v672
          %681 = vst [vmem:[%s311 + $0x38] sm:$0xff] %v673
        $region81: #{gcn_conv_model_forward.2} parent=68 // pred_fallthru
          _
        %s682 = smul.u32 8, %s18
        %p683 = scmp.lt.s32.totalorder %s682, 15
        %s684 = scalar_select %p683, %s682, 15
        %s685 = smul.addr %s684, 8
        %s686 = scalar_lea.vmem %s3, %s685
        // Predicated region
        $region82: #{gcn_conv_model_forward.2} parent=68 // pred_check
          %p687 = pneg %p119
        $region83: #{gcn_conv_model_forward.2} parent=68 // pred_check_branch
          %689 = sbr.rel (%p687) target = $region85
        $region84: #{gcn_conv_model_forward.2} parent=68 // pred_region
          %s690 = smul.u32 8, %s18
        $region85: #{gcn_conv_model_forward.2} parent=68 // pred_fallthru
          _
      $region69: #{gcn_conv_model_forward.2} parent=5 // pred_fallthru
        _
      %p691 = scmp.le.s32.totalorder 2, %s9
      // Predicated region
      $region86: #{gcn_conv_model_forward.2} parent=5 // pred_check
        %p692 = pneg %p691
      $region87: #{gcn_conv_model_forward.2} parent=5 // pred_check_branch
        %694 = sbr.rel (%p692) target = $region89
      $region88: #{gcn_conv_model_forward.2} parent=5 // pred_region
        %s695 = ssub.s32 %s9, 2
        // Predicated region
        $region90: #{gcn_conv_model_forward.2} parent=88 // pred_check
          %p696 = pneg %p125
        $region91: #{gcn_conv_model_forward.2} parent=88 // pred_check_branch
          %698 = sbr.rel (%p696) target = $region93
        $region92: #{gcn_conv_model_forward.2} parent=88 // pred_region
          %s699 = smul.u32 8, %s20
          %p700 = scmp.lt.s32.totalorder %s699, 15
          %s701 = scalar_select %p700, %s699, 15
          %s702 = smul.addr %s701, 8
          %s703 = scalar_lea.vmem %s3, %s702
        $region93: #{gcn_conv_model_forward.2} parent=88 // pred_fallthru
          _
      $region89: #{gcn_conv_model_forward.2} parent=5 // pred_fallthru
        _
    $region6: #{gcn_conv_model_forward.2} parent=1 // loop_footer
      %s13 = sadd.s32 1, %s9
    $region7: #{gcn_conv_model_forward.2} parent=1 // loop_footer_branch
      %8 = sbr.rel target = $region3
    $region8: #{gcn_conv_model_forward.2} parent=1 // loop_exit
      _

// kernel: gcn_conv_model_forward.3
$region0: #{gcn_conv_model_forward.3}
  #allocation0 [shape = 'u32[]', space=smem, size = 0x4, offset = 0x4, fixed_abs, tag = 'smem constant byte address 0x4 - core index']
  #allocation1 [shape = 'u32[144,128]{1,0:T(1,128)}', space=vmem, size = 0x12000, scoped, tag = 'internal scratch']
  #allocation2 [shape = 'f32[128,128]{1,0:T(8,128)}', space=vmem, size = 0x10000, scoped, tag = 'scratch operand']
  %s0 = inlined_call_operand.vmem [shape: bf16[256,256], index: 0, kind: input, shape index: {}]
  %s1 = inlined_call_operand.vmem [shape: bf16[256,128], index: 1, kind: input, shape index: {}]
  %s2 = inlined_call_operand.vmem [shape: f32[1,128], index: 2, kind: input, shape index: {}]
  %s3 = inlined_call_operand.vmem [shape: f32[256,128], index: 3, kind: output, shape index: {}]
  %s4 = sld [smem:[#allocation0]]
  $region94: #{gcn_conv_model_forward.3} parent=0
    _
  %s6 = ssub.s32 1, %s4
  %s7 = scalar_select 0, %s6, %s4
  $region1: #{gcn_conv_model_forward.3} parent=0
    #allocation3 [shape = 'u8[65536]{0}', space=vmem, size = 0x10000, scoped, tag = 'input window, operand 0']
    loop: start=0, step=1, limit=6
    $region2: #{gcn_conv_model_forward.3} parent=1 // loop_pre_header
      _
    $region3: #{gcn_conv_model_forward.3} parent=1 // loop_header
      %s9 = sphi 0, %s13
      %p10 = scmp.ge.s32.totalorder %s9, 6
      %s16 = sphi 0, %s28
      %s17 = sphi 0, %s24
      %s18 = sphi 0, %s16
      %s19 = sphi 0, %s17
      %s20 = sphi 0, %s18
      %s21 = sphi 0, %s19
      %s33 = sphi 0, %s35
      %s36 = sphi 0, %s33
      %s37 = sphi 0, %s36
      %s53 = sphi 0, %s37
      %s59 = sphi 0, %s61
      %s62 = sphi 0, %s59
      %s63 = sphi 0, %s62
      %s79 = sphi 0, %s63
      %s83 = sphi 0, %s83
      %s85 = sphi 0, %s83
      %s86 = sphi 0, %s85
      %s100 = sphi 0, %s86
      %s106 = sphi 0, %s108
      %s109 = sphi 0, %s106
      %s110 = sphi 0, %s109
      %s126 = sphi 0, %s110
    $region4: #{gcn_conv_model_forward.3} parent=1 // loop_header_branch
      %12 = sbr.rel (%p10) target = $region8
    $region5: #{gcn_conv_model_forward.3} parent=1 // loop_body
      %s14 = ssub.s32 %s9, 1
      %s15 = ssub.s32 %s9, 2
      %s22 = sadd.s32 1, %s17
      %p23 = scmp.ge.s32.totalorder %s22, 2
      %s24 = scalar_select %p23, 0, %s22
      %s25 = sadd.s32 1, %s16
      %s26 = scalar_select %p23, %s25, %s16
      %p27 = scmp.ge.s32.totalorder %s26, 2
      %s28 = scalar_select %p27, 0, %s26
      %s29 = ssub.s32 %s16, %s28
      %s30 = ssub.s32 %s17, %s24
      %s31 = sor.u32 %s29, %s30
      %p32 = scmp.eq.s32.totalorder %s31, 0
      %s34 = sadd.s32 %s33, 1
      %s35 = scalar_select %p32, %s33, %s34
      %p38 = pneg %p32
      %p39 = scmp.eq.s32.totalorder %s9, 3
      %p40 = por %p38, %p39
      %p41 = scmp.ne.s32.totalorder %s33, %s36
      %p42 = scmp.eq.s32.totalorder %s9, 0
      %p43 = por %p41, %p42
      %p44 = scmp.ne.s32.totalorder %s33, %s36
      %p45 = scmp.eq.s32.totalorder %s14, 3
      %p46 = por %p44, %p45
      %p47 = scmp.ne.s32.totalorder %s36, %s37
      %p48 = scmp.eq.s32.totalorder %s14, 0
      %p49 = por %p47, %p48
      %p50 = scmp.ne.s32.totalorder %s36, %s37
      %p51 = scmp.eq.s32.totalorder %s15, 3
      %p52 = por %p50, %p51
      %p54 = scmp.ne.s32.totalorder %s37, %s53
      %p55 = scmp.eq.s32.totalorder %s15, 0
      %p56 = por %p54, %p55
      %s57 = ssub.s32 %s17, %s24
      %p58 = scmp.eq.s32.totalorder %s57, 0
      %s60 = sadd.s32 %s59, 1
      %s61 = scalar_select %p58, %s59, %s60
      %p64 = pneg %p58
      %p65 = scmp.eq.s32.totalorder %s9, 3
      %p66 = por %p64, %p65
      %p67 = scmp.ne.s32.totalorder %s59, %s62
      %p68 = scmp.eq.s32.totalorder %s9, 0
      %p69 = por %p67, %p68
      %p70 = scmp.ne.s32.totalorder %s59, %s62
      %p71 = scmp.eq.s32.totalorder %s14, 3
      %p72 = por %p70, %p71
      %p73 = scmp.ne.s32.totalorder %s62, %s63
      %p74 = scmp.eq.s32.totalorder %s14, 0
      %p75 = por %p73, %p74
      %p76 = scmp.ne.s32.totalorder %s62, %s63
      %p77 = scmp.eq.s32.totalorder %s15, 3
      %p78 = por %p76, %p77
      %p80 = scmp.ne.s32.totalorder %s63, %s79
      %p81 = scmp.eq.s32.totalorder %s15, 0
      %p82 = por %p80, %p81
      %s84 = sadd.s32 %s83, 1
      %p87 = scmp.eq.s32.totalorder %s9, 3
      %p88 = scmp.ne.s32.totalorder %s83, %s85
      %p89 = scmp.eq.s32.totalorder %s9, 0
      %p90 = por %p88, %p89
      %p91 = scmp.ne.s32.totalorder %s83, %s85
      %p92 = scmp.eq.s32.totalorder %s14, 3
      %p93 = por %p91, %p92
      %p94 = scmp.ne.s32.totalorder %s85, %s86
      %p95 = scmp.eq.s32.totalorder %s14, 0
      %p96 = por %p94, %p95
      %p97 = scmp.ne.s32.totalorder %s85, %s86
      %p98 = scmp.eq.s32.totalorder %s15, 3
      %p99 = por %p97, %p98
      %p101 = scmp.ne.s32.totalorder %s86, %s100
      %p102 = scmp.eq.s32.totalorder %s15, 0
      %p103 = por %p101, %p102
      %s104 = ssub.s32 %s16, %s28
      %p105 = scmp.eq.s32.totalorder %s104, 0
      %s107 = sadd.s32 %s106, 1
      %s108 = scalar_select %p105, %s106, %s107
      %p111 = pneg %p105
      %p112 = scmp.eq.s32.totalorder %s9, 3
      %p113 = por %p111, %p112
      %p114 = scmp.ne.s32.totalorder %s106, %s109
      %p115 = scmp.eq.s32.totalorder %s9, 0
      %p116 = por %p114, %p115
      %p117 = scmp.ne.s32.totalorder %s106, %s109
      %p118 = scmp.eq.s32.totalorder %s14, 3
      %p119 = por %p117, %p118
      %p120 = scmp.ne.s32.totalorder %s109, %s110
      %p121 = scmp.eq.s32.totalorder %s14, 0
      %p122 = por %p120, %p121
      %p123 = scmp.ne.s32.totalorder %s109, %s110
      %p124 = scmp.eq.s32.totalorder %s15, 3
      %p125 = por %p123, %p124
      %p127 = scmp.ne.s32.totalorder %s110, %s126
      %p128 = scmp.eq.s32.totalorder %s15, 0
      %p129 = por %p127, %p128
      %p130 = scmp.le.s32.totalorder 1, %s9
      %p131 = scmp.lt.s32.totalorder %s9, 5
      %p132 = pnand %p130, %p131
      %p133 = pneg %p132
      // Predicated region
      $region9: #{gcn_conv_model_forward.3} parent=5 // pred_check
        _
      $region10: #{gcn_conv_model_forward.3} parent=5 // pred_check_branch
        %135 = sbr.rel (%p132) target = $region12
      $region11: #{gcn_conv_model_forward.3} parent=5 // pred_region
        %s136 = ssub.s32 %s9, 1
        // Predicated region
        $region13: #{gcn_conv_model_forward.3} parent=11 // pred_check
          %p137 = pneg %p96
        $region14: #{gcn_conv_model_forward.3} parent=11 // pred_check_branch
          %139 = sbr.rel (%p137) target = $region16
        $region15: #{gcn_conv_model_forward.3} parent=11 // pred_region
          _
        $region16: #{gcn_conv_model_forward.3} parent=11 // pred_fallthru
          _
      $region12: #{gcn_conv_model_forward.3} parent=5 // pred_fallthru
        _
      %p140 = scmp.lt.s32.totalorder %s9, 4
      // Predicated region
      $region17: #{gcn_conv_model_forward.3} parent=5 // pred_check
        %p141 = pneg %p140
      $region18: #{gcn_conv_model_forward.3} parent=5 // pred_check_branch
        %143 = sbr.rel (%p141) target = $region20
      $region19: #{gcn_conv_model_forward.3} parent=5 // pred_region
        // Predicated region
        $region21: #{gcn_conv_model_forward.3} parent=19 // pred_check
          %p144 = pneg %p43
        $region22: #{gcn_conv_model_forward.3} parent=19 // pred_check_branch
          %146 = sbr.rel (%p144) target = $region24
        $region23: #{gcn_conv_model_forward.3} parent=19 // pred_region
          %s147 = sand.u32 %s33, 1
          %s148 = sand.u32 %s33, 1
          %s149 = smul.addr %s148, 64
          %s150 = scalar_lea.vmem [#allocation3], %s149
          %s151 = smul.u32 16, %s16
          %s152 = smul.addr %s151, 2
          %s153 = sadd.s32 %s17, %s152
          %s154 = smul.addr %s153, 4
          %s155 = scalar_lea.vmem %s0, %s154
          // Predicated region
          $region25: #{gcn_conv_model_forward.3} parent=23 // pred_check
            _
          $region26: #{gcn_conv_model_forward.3} parent=23 // pred_check_branch
            %157 = sbr.rel (0) target = $region28
          $region27: #{gcn_conv_model_forward.3} parent=23 // pred_region
            // Predicated region
            $region29: #{gcn_conv_model_forward.3} parent=27 // pred_check
              _
            $region30: #{gcn_conv_model_forward.3} parent=27 // pred_check_branch
              %159 = sbr.rel target = $region32
            $region31: #{gcn_conv_model_forward.3} parent=27 // pred_region
              // Predicated region
              $region44: #{gcn_conv_model_forward.3} parent=31 // pred_check
                _
              $region45: #{gcn_conv_model_forward.3} parent=31 // pred_check_branch
                %204 = sbr.rel (0) target = $region47
              $region46: #{gcn_conv_model_forward.3} parent=31 // pred_region
                loop: start=0, step=1, limit=1
                $region48: #{gcn_conv_model_forward.3} parent=46 // loop_pre_header
                  _
                $region49: #{gcn_conv_model_forward.3} parent=46 // loop_header
                  %s206 = sphi 0, %s210
                  %p207 = scmp.ge.s32.totalorder %s206, 1
                  %s211 = sphi %s155, %s155
                  %s212 = sphi %s150, %s150
                $region50: #{gcn_conv_model_forward.3} parent=46 // loop_header_branch
                  %209 = sbr.rel (%p207) target = $region54
                $region51: #{gcn_conv_model_forward.3} parent=46 // loop_body
                  _
                $region52: #{gcn_conv_model_forward.3} parent=46 // loop_footer
                  %s210 = sadd.s32 1, %s206
                $region53: #{gcn_conv_model_forward.3} parent=46 // loop_footer_branch
                  %205 = sbr.rel target = $region49
                $region54: #{gcn_conv_model_forward.3} parent=46 // loop_exit
                  _
                loop: start=0, step=1, limit=1
                $region55: #{gcn_conv_model_forward.3} parent=46 // loop_pre_header
                  _
                $region56: #{gcn_conv_model_forward.3} parent=46 // loop_header
                  %s215 = sphi 0, %s219
                  %p216 = scmp.ge.s32.totalorder %s215, 1
                  %s220 = sphi %s155, %s155
                  %s221 = sphi %s150, %s150
                $region57: #{gcn_conv_model_forward.3} parent=46 // loop_header_branch
                  %218 = sbr.rel (%p216) target = $region61
                $region58: #{gcn_conv_model_forward.3} parent=46 // loop_body
                  %v222 = vld [vmem:[%s220] sm:$0xf]
                  %223 = vst [vmem:[%s221] sm:$0xf] %v222
                  %v224 = vld [vmem:[%s220 + $0x8] sm:$0xf]
                  %225 = vst [vmem:[%s221 + $0x4] sm:$0xf] %v224
                  %v226 = vld [vmem:[%s220 + $0x10] sm:$0xf]
                  %227 = vst [vmem:[%s221 + $0x8] sm:$0xf] %v226
                  %v228 = vld [vmem:[%s220 + $0x18] sm:$0xf]
                  %229 = vst [vmem:[%s221 + $0xc] sm:$0xf] %v228
                  %v230 = vld [vmem:[%s220 + $0x20] sm:$0xf]
                  %231 = vst [vmem:[%s221 + $0x10] sm:$0xf] %v230
                  %v232 = vld [vmem:[%s220 + $0x28] sm:$0xf]
                  %233 = vst [vmem:[%s221 + $0x14] sm:$0xf] %v232
                  %v234 = vld [vmem:[%s220 + $0x30] sm:$0xf]
                  %235 = vst [vmem:[%s221 + $0x18] sm:$0xf] %v234
                  %v236 = vld [vmem:[%s220 + $0x38] sm:$0xf]
                  %237 = vst [vmem:[%s221 + $0x1c] sm:$0xf] %v236
                  %v238 = vld [vmem:[%s220 + $0x40] sm:$0xf]
                  %239 = vst [vmem:[%s221 + $0x20] sm:$0xf] %v238
                  %v240 = vld [vmem:[%s220 + $0x48] sm:$0xf]
                  %241 = vst [vmem:[%s221 + $0x24] sm:$0xf] %v240
                  %v242 = vld [vmem:[%s220 + $0x50] sm:$0xf]
                  %243 = vst [vmem:[%s221 + $0x28] sm:$0xf] %v242
                  %v244 = vld [vmem:[%s220 + $0x58] sm:$0xf]
                  %245 = vst [vmem:[%s221 + $0x2c] sm:$0xf] %v244
                  %v246 = vld [vmem:[%s220 + $0x60] sm:$0xf]
                  %247 = vst [vmem:[%s221 + $0x30] sm:$0xf] %v246
                  %v248 = vld [vmem:[%s220 + $0x68] sm:$0xf]
                  %249 = vst [vmem:[%s221 + $0x34] sm:$0xf] %v248
                  %v250 = vld [vmem:[%s220 + $0x70] sm:$0xf]
                  %251 = vst [vmem:[%s221 + $0x38] sm:$0xf] %v250
                  %v252 = vld [vmem:[%s220 + $0x78] sm:$0xf]
                  %253 = vst [vmem:[%s221 + $0x3c] sm:$0xf] %v252
                $region59: #{gcn_conv_model_forward.3} parent=46 // loop_footer
                  %s219 = sadd.s32 1, %s215
                $region60: #{gcn_conv_model_forward.3} parent=46 // loop_footer_branch
                  %214 = sbr.rel target = $region56
                $region61: #{gcn_conv_model_forward.3} parent=46 // loop_exit
                  _
              $region47: #{gcn_conv_model_forward.3} parent=31 // pred_fallthru
                _
            $region32: #{gcn_conv_model_forward.3} parent=27 // pred_fallthru
              _
            // Predicated region
            $region33: #{gcn_conv_model_forward.3} parent=27 // pred_check
              _
            $region34: #{gcn_conv_model_forward.3} parent=27 // pred_check_branch
              %161 = sbr.rel (0) target = $region36
            $region35: #{gcn_conv_model_forward.3} parent=27 // pred_region
              loop: start=0, step=1, limit=1
              $region37: #{gcn_conv_model_forward.3} parent=35 // loop_pre_header
                _
              $region38: #{gcn_conv_model_forward.3} parent=35 // loop_header
                %s164 = sphi 0, %s168
                %p165 = scmp.ge.s32.totalorder %s164, 1
                %s169 = sphi %s155, %s155
                %s170 = sphi %s150, %s150
              $region39: #{gcn_conv_model_forward.3} parent=35 // loop_header_branch
                %167 = sbr.rel (%p165) target = $region43
              $region40: #{gcn_conv_model_forward.3} parent=35 // loop_body
                %v171 = vld [vmem:[%s169] sm:$0xf]
                %172 = vst [vmem:[%s170] sm:$0xf] %v171
                %v173 = vld [vmem:[%s169 + $0x8] sm:$0xf]
                %174 = vst [vmem:[%s170 + $0x4] sm:$0xf] %v173
                %v175 = vld [vmem:[%s169 + $0x10] sm:$0xf]
                %176 = vst [vmem:[%s170 + $0x8] sm:$0xf] %v175
                %v177 = vld [vmem:[%s169 + $0x18] sm:$0xf]
                %178 = vst [vmem:[%s170 + $0xc] sm:$0xf] %v177
                %v179 = vld [vmem:[%s169 + $0x20] sm:$0xf]
                %180 = vst [vmem:[%s170 + $0x10] sm:$0xf] %v179
                %v181 = vld [vmem:[%s169 + $0x28] sm:$0xf]
                %182 = vst [vmem:[%s170 + $0x14] sm:$0xf] %v181
                %v183 = vld [vmem:[%s169 + $0x30] sm:$0xf]
                %184 = vst [vmem:[%s170 + $0x18] sm:$0xf] %v183
                %v185 = vld [vmem:[%s169 + $0x38] sm:$0xf]
                %186 = vst [vmem:[%s170 + $0x1c] sm:$0xf] %v185
                %v187 = vld [vmem:[%s169 + $0x40] sm:$0xf]
                %188 = vst [vmem:[%s170 + $0x20] sm:$0xf] %v187
                %v189 = vld [vmem:[%s169 + $0x48] sm:$0xf]
                %190 = vst [vmem:[%s170 + $0x24] sm:$0xf] %v189
                %v191 = vld [vmem:[%s169 + $0x50] sm:$0xf]
                %192 = vst [vmem:[%s170 + $0x28] sm:$0xf] %v191
                %v193 = vld [vmem:[%s169 + $0x58] sm:$0xf]
                %194 = vst [vmem:[%s170 + $0x2c] sm:$0xf] %v193
                %v195 = vld [vmem:[%s169 + $0x60] sm:$0xf]
                %196 = vst [vmem:[%s170 + $0x30] sm:$0xf] %v195
                %v197 = vld [vmem:[%s169 + $0x68] sm:$0xf]
                %198 = vst [vmem:[%s170 + $0x34] sm:$0xf] %v197
                %v199 = vld [vmem:[%s169 + $0x70] sm:$0xf]
                %200 = vst [vmem:[%s170 + $0x38] sm:$0xf] %v199
                %v201 = vld [vmem:[%s169 + $0x78] sm:$0xf]
                %202 = vst [vmem:[%s170 + $0x3c] sm:$0xf] %v201
              $region41: #{gcn_conv_model_forward.3} parent=35 // loop_footer
                %s168 = sadd.s32 1, %s164
              $region42: #{gcn_conv_model_forward.3} parent=35 // loop_footer_branch
                %163 = sbr.rel target = $region38
              $region43: #{gcn_conv_model_forward.3} parent=35 // loop_exit
                _
            $region36: #{gcn_conv_model_forward.3} parent=27 // pred_fallthru
              _
          $region28: #{gcn_conv_model_forward.3} parent=23 // pred_fallthru
            _
          %254 = vnop
        $region24: #{gcn_conv_model_forward.3} parent=19 // pred_fallthru
          _
        // Predicated region
        $region62: #{gcn_conv_model_forward.3} parent=19 // pred_check
          %p255 = pneg %p69
        $region63: #{gcn_conv_model_forward.3} parent=19 // pred_check_branch
          %257 = sbr.rel (%p255) target = $region65
        $region64: #{gcn_conv_model_forward.3} parent=19 // pred_region
          %s258 = smul.u32 16, %s17
          %p259 = scmp.lt.s32.totalorder %s258, 31
          %s260 = scalar_select %p259, %s258, 31
          %s261 = smul.addr %s260, 4
          %s262 = scalar_lea.vmem %s1, %s261
          %s263 = smul.u32 16, %s17
        $region65: #{gcn_conv_model_forward.3} parent=19 // pred_fallthru
          _
      $region20: #{gcn_conv_model_forward.3} parent=5 // pred_fallthru
        _
      %p264 = scmp.le.s32.totalorder 1, %s9
      %p265 = scmp.lt.s32.totalorder %s9, 5
      %p266 = pnand %p264, %p265
      %p267 = pneg %p266
      // Predicated region
      $region66: #{gcn_conv_model_forward.3} parent=5 // pred_check
        _
      $region67: #{gcn_conv_model_forward.3} parent=5 // pred_check_branch
        %269 = sbr.rel (%p266) target = $region69
      $region68: #{gcn_conv_model_forward.3} parent=5 // pred_region
        %s270 = ssub.s32 %s9, 1
        %s271 = sand.u32 %s36, 1
        %s272 = sand.u32 %s36, 1
        %s273 = smul.addr %s272, 64
        %s274 = scalar_lea.vmem [#allocation3], %s273
        // Predicated region
        $region70: #{gcn_conv_model_forward.3} parent=68 // pred_check
          %p275 = pneg %p49
        $region71: #{gcn_conv_model_forward.3} parent=68 // pred_check_branch
          %277 = sbr.rel (%p275) target = $region73
        $region72: #{gcn_conv_model_forward.3} parent=68 // pred_region
          _
        $region73: #{gcn_conv_model_forward.3} parent=68 // pred_fallthru
          _
        %s278 = sand.u32 %s36, 1
        %s279 = sand.u32 %s36, 1
        %s280 = smul.addr %s279, 64
        %s281 = scalar_lea.vmem [#allocation3], %s280
        %p282 = pneg %p49
        %p283 = pneg %p46
        %s284 = smul.u32 16, %s19
        %p285 = scmp.lt.s32.totalorder %s284, 31
        %s286 = scalar_select %p285, %s284, 31
        %s287 = smul.addr %s286, 4
        %s288 = scalar_lea.vmem %s1, %s287
        %p289 = pneg %p75
        %p290 = pneg %p72
        %p291 = pneg %p96
        %p292 = pneg %p93
        %p293 = pneg %p122
        %p294 = pneg %p119
        %s295 = smul.u32 16, %s18
        %p296 = scmp.lt.s32.totalorder %s295, 31
        %s297 = scalar_select %p296, %s295, 31
        %s298 = smul.addr %s297, 8
        %s299 = scalar_lea.vmem %s3, %s298
        %s300 = smul.u32 16, %s18
        %s301 = smul.u32 16, %s19
        %p302 = scmp.lt.s32.totalorder %s301, 31
        %s303 = scalar_select %p302, %s301, 31
        %s304 = smul.addr %s303, 4
        %s305 = scalar_lea.vmem %s1, %s304
        %s306 = smul.u32 16, %s19
        %s307 = smul.u32 16, %s18
        %p308 = scmp.lt.s32.totalorder %s307, 31
        %s309 = scalar_select %p308, %s307, 31
        %s310 = smul.addr %s309, 8
        %s311 = scalar_lea.vmem %s3, %s310
        %s312 = smul.u32 16, %s18
        %p314 = scmp.eq.s32.totalorder %s19, 0
        // Predicated region
        $region74: #{gcn_conv_model_forward.3} parent=68 // pred_check
          %p315 = pneg %p314
        $region75: #{gcn_conv_model_forward.3} parent=68 // pred_check_branch
          %317 = sbr.rel (%p315) target = $region77
        $region76: #{gcn_conv_model_forward.3} parent=68 // pred_region
          %318 = vst [vmem:[#allocation2] sm:$0xff] 0.0
          %319 = vst [vmem:[#allocation2 + $0x8] sm:$0xff] 0.0
          %320 = vst [vmem:[#allocation2 + $0x10] sm:$0xff] 0.0
          %321 = vst [vmem:[#allocation2 + $0x18] sm:$0xff] 0.0
          %322 = vst [vmem:[#allocation2 + $0x20] sm:$0xff] 0.0
          %323 = vst [vmem:[#allocation2 + $0x28] sm:$0xff] 0.0
          %324 = vst [vmem:[#allocation2 + $0x30] sm:$0xff] 0.0
          %325 = vst [vmem:[#allocation2 + $0x38] sm:$0xff] 0.0
          %326 = vst [vmem:[#allocation2 + $0x40] sm:$0xff] 0.0
          %327 = vst [vmem:[#allocation2 + $0x48] sm:$0xff] 0.0
          %328 = vst [vmem:[#allocation2 + $0x50] sm:$0xff] 0.0
          %329 = vst [vmem:[#allocation2 + $0x58] sm:$0xff] 0.0
          %330 = vst [vmem:[#allocation2 + $0x60] sm:$0xff] 0.0
          %331 = vst [vmem:[#allocation2 + $0x68] sm:$0xff] 0.0
          %332 = vst [vmem:[#allocation2 + $0x70] sm:$0xff] 0.0
          %333 = vst [vmem:[#allocation2 + $0x78] sm:$0xff] 0.0
        $region77: #{gcn_conv_model_forward.3} parent=68 // pred_fallthru
          _
        %v334 = vld [vmem:[#allocation2] sm:$0xff]
        %v335 = vld [vmem:[#allocation2 + $0x8] sm:$0xff]
        %v336 = vld [vmem:[#allocation2 + $0x10] sm:$0xff]
        %v337 = vld [vmem:[#allocation2 + $0x18] sm:$0xff]
        %v338 = vld [vmem:[#allocation2 + $0x20] sm:$0xff]
        %v339 = vld [vmem:[#allocation2 + $0x28] sm:$0xff]
        %v340 = vld [vmem:[#allocation2 + $0x30] sm:$0xff]
        %v341 = vld [vmem:[#allocation2 + $0x38] sm:$0xff]
        %v342 = vld [vmem:[#allocation2 + $0x40] sm:$0xff]
        %v343 = vld [vmem:[#allocation2 + $0x48] sm:$0xff]
        %v344 = vld [vmem:[#allocation2 + $0x50] sm:$0xff]
        %v345 = vld [vmem:[#allocation2 + $0x58] sm:$0xff]
        %v346 = vld [vmem:[#allocation2 + $0x60] sm:$0xff]
        %v347 = vld [vmem:[#allocation2 + $0x68] sm:$0xff]
        %v348 = vld [vmem:[#allocation2 + $0x70] sm:$0xff]
        %v349 = vld [vmem:[#allocation2 + $0x78] sm:$0xff]
        %v350 = vld [vmem:[%s274] sm:$0xf]
        %v351 = vld [vmem:[%s274 + $0x4] sm:$0xf]
        %v352 = vld [vmem:[%s274 + $0x8] sm:$0xf]
        %v353 = vld [vmem:[%s274 + $0xc] sm:$0xf]
        %v354 = vld [vmem:[%s274 + $0x10] sm:$0xf]
        %v355 = vld [vmem:[%s274 + $0x14] sm:$0xf]
        %v356 = vld [vmem:[%s274 + $0x18] sm:$0xf]
        %v357 = vld [vmem:[%s274 + $0x1c] sm:$0xf]
        %v358 = vld [vmem:[%s274 + $0x20] sm:$0xf]
        %v359 = vld [vmem:[%s274 + $0x24] sm:$0xf]
        %v360 = vld [vmem:[%s274 + $0x28] sm:$0xf]
        %v361 = vld [vmem:[%s274 + $0x2c] sm:$0xf]
        %v362 = vld [vmem:[%s274 + $0x30] sm:$0xf]
        %v363 = vld [vmem:[%s274 + $0x34] sm:$0xf]
        %v364 = vld [vmem:[%s274 + $0x38] sm:$0xf]
        %v365 = vld [vmem:[%s274 + $0x3c] sm:$0xf]
        %v366 = vld [vmem:[%s305] sm:$0xf]
        %v367 = vld [vmem:[%s305 + $0x4] sm:$0xf]
        %v368 = vld [vmem:[%s305 + $0x8] sm:$0xf]
        %v369 = vld [vmem:[%s305 + $0xc] sm:$0xf]
        %v370 = vld [vmem:[%s305 + $0x10] sm:$0xf]
        %v371 = vld [vmem:[%s305 + $0x14] sm:$0xf]
        %v372 = vld [vmem:[%s305 + $0x18] sm:$0xf]
        %v373 = vld [vmem:[%s305 + $0x1c] sm:$0xf]
        %v374 = vld [vmem:[%s305 + $0x20] sm:$0xf]
        %v375 = vld [vmem:[%s305 + $0x24] sm:$0xf]
        %v376 = vld [vmem:[%s305 + $0x28] sm:$0xf]
        %v377 = vld [vmem:[%s305 + $0x2c] sm:$0xf]
        %v378 = vld [vmem:[%s305 + $0x30] sm:$0xf]
        %v379 = vld [vmem:[%s305 + $0x34] sm:$0xf]
        %v380 = vld [vmem:[%s305 + $0x38] sm:$0xf]
        %v381 = vld [vmem:[%s305 + $0x3c] sm:$0xf]
        %v398 = vunpack.c.l.b16 %v350
        %v399 = vunpack.c.l.b16 %v351
        %v400 = vunpack.c.l.b16 %v352
        %v401 = vunpack.c.l.b16 %v353
        %v402 = vunpack.c.l.b16 %v354
        %v403 = vunpack.c.l.b16 %v355
        %v404 = vunpack.c.l.b16 %v356
        %v405 = vunpack.c.l.b16 %v357
        %v406 = vunpack.c.l.b16 %v358
        %v407 = vunpack.c.l.b16 %v359
        %v408 = vunpack.c.l.b16 %v360
        %v409 = vunpack.c.l.b16 %v361
        %v410 = vunpack.c.l.b16 %v362
        %v411 = vunpack.c.l.b16 %v363
        %v412 = vunpack.c.l.b16 %v364
        %v413 = vunpack.c.l.b16 %v365
        %v414 = vpack.c.b16 %v399, %v398
        %v415 = vpack.c.b16 %v401, %v400
        %v416 = vpack.c.b16 %v403, %v402
        %v417 = vpack.c.b16 %v405, %v404
        %v418 = vpack.c.b16 %v407, %v406
        %v419 = vpack.c.b16 %v409, %v408
        %v420 = vpack.c.b16 %v411, %v410
        %v421 = vpack.c.b16 %v413, %v412
        %v446 = vunpack.c.l.b16 %v366
        %v447 = vunpack.c.l.b16 %v367
        %v448 = vunpack.c.l.b16 %v368
        %v449 = vunpack.c.l.b16 %v369
        %v450 = vunpack.c.l.b16 %v370
        %v451 = vunpack.c.l.b16 %v371
        %v452 = vunpack.c.l.b16 %v372
        %v453 = vunpack.c.l.b16 %v373
        %v454 = vunpack.c.l.b16 %v374
        %v455 = vunpack.c.l.b16 %v375
        %v456 = vunpack.c.l.b16 %v376
        %v457 = vunpack.c.l.b16 %v377
        %v458 = vunpack.c.l.b16 %v378
        %v459 = vunpack.c.l.b16 %v379
        %v460 = vunpack.c.l.b16 %v380
        %v461 = vunpack.c.l.b16 %v381
        %v462 = vpack.c.b16 %v447, %v446
        %v463 = vpack.c.b16 %v449, %v448
        %v464 = vpack.c.b16 %v451, %v450
        %v465 = vpack.c.b16 %v453, %v452
        %v466 = vpack.c.b16 %v455, %v454
        %v467 = vpack.c.b16 %v457, %v456
        %v468 = vpack.c.b16 %v459, %v458
        %v469 = vpack.c.b16 %v461, %v460
        %478 = vmatprep.subr.bf16.mxu0 0
        %479 = vmatpush1.bf16.msra.mxu0 %v462
        %480 = vmatprep.subr.bf16.mxu0 0
        %481 = vmatpush1.bf16.msra.mxu0 %v463
        %482 = vmatprep.subr.bf16.mxu0 0
        %483 = vmatpush1.bf16.msra.mxu0 %v464
        %484 = vmatprep.subr.bf16.mxu0 0
        %485 = vmatpush1.bf16.msra.mxu0 %v465
        %486 = vmatprep.subr.bf16.mxu0 0
        %487 = vmatpush1.bf16.msra.mxu0 %v466
        %488 = vmatprep.subr.bf16.mxu0 0
        %489 = vmatpush1.bf16.msra.mxu0 %v467
        %490 = vmatprep.subr.bf16.mxu0 0
        %491 = vmatpush1.bf16.msra.mxu0 %v468
        %492 = vmatprep.subr.bf16.mxu0 0
        %493 = vmatpush1.bf16.msra.mxu0 %v469
        %494 = vmatprep.subr.bf16.mxu0 0
        %495 = vmatpush1.bf16.msra.mxu0 0
        %496 = vmatprep.subr.bf16.mxu0 0
        %497 = vmatpush1.bf16.msra.mxu0 0
        %498 = vmatprep.subr.bf16.mxu0 0
        %499 = vmatpush1.bf16.msra.mxu0 0
        %500 = vmatprep.subr.bf16.mxu0 0
        %501 = vmatpush1.bf16.msra.mxu0 0
        %502 = vmatprep.subr.bf16.mxu0 0
        %503 = vmatpush1.bf16.msra.mxu0 0
        %504 = vmatprep.subr.bf16.mxu0 0
        %505 = vmatpush1.bf16.msra.mxu0 0
        %506 = vmatprep.subr.bf16.mxu0 0
        %507 = vmatpush1.bf16.msra.mxu0 0
        %508 = vmatprep.subr.bf16.mxu0 0
        %509 = vmatpush1.bf16.msra.mxu0 0
        %510 = vmatprep.mubr.bf16.mxu0 0
        %511 = vmatmul.mubr.bf16.gmra.mrb[0].mxu0 %v414
        %v512 = vpop.f32.mrb[0].mxu0
        %v513 = vadd.f32 0.0, %v512
        %v514 = vpop.f32.mrb[0].mxu0
        %v515 = vpop.f32.mrb[0].mxu0
        %v516 = vadd.f32 0.0, %v515
        %v517 = vpop.f32.mrb[0].mxu0
        %518 = vmatprep.mubr.bf16.mxu0 0
        %519 = vmatmul.mubr.bf16.gmra.mrb[0].mxu0 %v415
        %v520 = vpop.f32.mrb[0].mxu0
        %v521 = vadd.f32 0.0, %v520
        %v522 = vpop.f32.mrb[0].mxu0
        %v523 = vpop.f32.mrb[0].mxu0
        %v524 = vadd.f32 0.0, %v523
        %v525 = vpop.f32.mrb[0].mxu0
        %526 = vmatprep.mubr.bf16.mxu0 0
        %527 = vmatmul.mubr.bf16.gmra.mrb[0].mxu0 %v416
        %v528 = vpop.f32.mrb[0].mxu0
        %v529 = vadd.f32 0.0, %v528
        %v530 = vpop.f32.mrb[0].mxu0
        %v531 = vpop.f32.mrb[0].mxu0
        %v532 = vadd.f32 0.0, %v531
        %v533 = vpop.f32.mrb[0].mxu0
        %534 = vmatprep.mubr.bf16.mxu0 0
        %535 = vmatmul.mubr.bf16.gmra.mrb[0].mxu0 %v417
        %v536 = vpop.f32.mrb[0].mxu0
        %v537 = vadd.f32 0.0, %v536
        %v538 = vpop.f32.mrb[0].mxu0
        %v539 = vpop.f32.mrb[0].mxu0
        %v540 = vadd.f32 0.0, %v539
        %v541 = vpop.f32.mrb[0].mxu0
        %542 = vmatprep.mubr.bf16.mxu0 0
        %543 = vmatmul.mubr.bf16.gmra.mrb[0].mxu0 %v418
        %v544 = vpop.f32.mrb[0].mxu0
        %v545 = vadd.f32 0.0, %v544
        %v546 = vpop.f32.mrb[0].mxu0
        %v547 = vpop.f32.mrb[0].mxu0
        %v548 = vadd.f32 0.0, %v547
        %v549 = vpop.f32.mrb[0].mxu0
        %550 = vmatprep.mubr.bf16.mxu0 0
        %551 = vmatmul.mubr.bf16.gmra.mrb[0].mxu0 %v419
        %v552 = vpop.f32.mrb[0].mxu0
        %v553 = vadd.f32 0.0, %v552
        %v554 = vpop.f32.mrb[0].mxu0
        %v555 = vpop.f32.mrb[0].mxu0
        %v556 = vadd.f32 0.0, %v555
        %v557 = vpop.f32.mrb[0].mxu0
        %558 = vmatprep.mubr.bf16.mxu0 0
        %559 = vmatmul.mubr.bf16.gmra.mrb[0].mxu0 %v420
        %v560 = vpop.f32.mrb[0].mxu0
        %v561 = vadd.f32 0.0, %v560
        %v562 = vpop.f32.mrb[0].mxu0
        %v563 = vpop.f32.mrb[0].mxu0
        %v564 = vadd.f32 0.0, %v563
        %v565 = vpop.f32.mrb[0].mxu0
        %566 = vmatprep.mubr.bf16.mxu0 0
        %567 = vmatmul.mubr.bf16.gmra.mrb[0].mxu0 %v421
        %v568 = vpop.f32.mrb[0].mxu0
        %v569 = vadd.f32 0.0, %v568
        %v570 = vpop.f32.mrb[0].mxu0
        %v571 = vpop.f32.mrb[0].mxu0
        %v572 = vadd.f32 0.0, %v571
        %v573 = vpop.f32.mrb[0].mxu0
        %574 = vdwg.mxu0
        %v575 = vadd.f32 %v334, %v513
        %v576 = vadd.f32 %v335, %v516
        %v577 = vadd.f32 %v336, %v521
        %v578 = vadd.f32 %v337, %v524
        %v579 = vadd.f32 %v338, %v529
        %v580 = vadd.f32 %v339, %v532
        %v581 = vadd.f32 %v340, %v537
        %v582 = vadd.f32 %v341, %v540
        %v583 = vadd.f32 %v342, %v545
        %v584 = vadd.f32 %v343, %v548
        %v585 = vadd.f32 %v344, %v553
        %v586 = vadd.f32 %v345, %v556
        %v587 = vadd.f32 %v346, %v561
        %v588 = vadd.f32 %v347, %v564
        %v589 = vadd.f32 %v348, %v569
        %v590 = vadd.f32 %v349, %v572
        %591 = vst [vmem:[#allocation2] sm:$0xff] %v575
        %592 = vst [vmem:[#allocation2 + $0x8] sm:$0xff] %v576
        %593 = vst [vmem:[#allocation2 + $0x10] sm:$0xff] %v577
        %594 = vst [vmem:[#allocation2 + $0x18] sm:$0xff] %v578
        %595 = vst [vmem:[#allocation2 + $0x20] sm:$0xff] %v579
        %596 = vst [vmem:[#allocation2 + $0x28] sm:$0xff] %v580
        %597 = vst [vmem:[#allocation2 + $0x30] sm:$0xff] %v581
        %598 = vst [vmem:[#allocation2 + $0x38] sm:$0xff] %v582
        %599 = vst [vmem:[#allocation2 + $0x40] sm:$0xff] %v583
        %600 = vst [vmem:[#allocation2 + $0x48] sm:$0xff] %v584
        %601 = vst [vmem:[#allocation2 + $0x50] sm:$0xff] %v585
        %602 = vst [vmem:[#allocation2 + $0x58] sm:$0xff] %v586
        %603 = vst [vmem:[#allocation2 + $0x60] sm:$0xff] %v587
        %604 = vst [vmem:[#allocation2 + $0x68] sm:$0xff] %v588
        %605 = vst [vmem:[#allocation2 + $0x70] sm:$0xff] %v589
        %606 = vst [vmem:[#allocation2 + $0x78] sm:$0xff] %v590
        %p607 = scmp.eq.s32.totalorder %s19, 1
        // Predicated region
        $region78: #{gcn_conv_model_forward.3} parent=68 // pred_check
          %p608 = pneg %p607
        $region79: #{gcn_conv_model_forward.3} parent=68 // pred_check_branch
          %610 = sbr.rel (%p608) target = $region81
        $region80: #{gcn_conv_model_forward.3} parent=68 // pred_region
          %v611 = vld [vmem:[#allocation2] sm:$0xff]
          %v612 = vld [vmem:[#allocation2 + $0x8] sm:$0xff]
          %v613 = vld [vmem:[#allocation2 + $0x10] sm:$0xff]
          %v614 = vld [vmem:[#allocation2 + $0x18] sm:$0xff]
          %v615 = vld [vmem:[#allocation2 + $0x20] sm:$0xff]
          %v616 = vld [vmem:[#allocation2 + $0x28] sm:$0xff]
          %v617 = vld [vmem:[#allocation2 + $0x30] sm:$0xff]
          %v618 = vld [vmem:[#allocation2 + $0x38] sm:$0xff]
          %v619 = vld [vmem:[#allocation2 + $0x40] sm:$0xff]
          %v620 = vld [vmem:[#allocation2 + $0x48] sm:$0xff]
          %v621 = vld [vmem:[#allocation2 + $0x50] sm:$0xff]
          %v622 = vld [vmem:[#allocation2 + $0x58] sm:$0xff]
          %v623 = vld [vmem:[#allocation2 + $0x60] sm:$0xff]
          %v624 = vld [vmem:[#allocation2 + $0x68] sm:$0xff]
          %v625 = vld [vmem:[#allocation2 + $0x70] sm:$0xff]
          %v626 = vld [vmem:[#allocation2 + $0x78] sm:$0xff]
          %v627 = vld [vmem:[%s2] sm:$0x1]
          %v629 = vlaneseq
          %v630 = vshrl.u32 %v629, 7
          %v631 = vsub.s32 0, %v630
          %v632 = vrot.slane %v627, %v631
          %v634 = vadd.f32 %v611, %v632
          %v635 = vadd.f32 %v612, %v632
          %v636 = vadd.f32 %v613, %v632
          %v637 = vadd.f32 %v614, %v632
          %v638 = vadd.f32 %v615, %v632
          %v639 = vadd.f32 %v616, %v632
          %v640 = vadd.f32 %v617, %v632
          %v641 = vadd.f32 %v618, %v632
          %v642 = vadd.f32 %v619, %v632
          %v643 = vadd.f32 %v620, %v632
          %v644 = vadd.f32 %v621, %v632
          %v645 = vadd.f32 %v622, %v632
          %v646 = vadd.f32 %v623, %v632
          %v647 = vadd.f32 %v624, %v632
          %v648 = vadd.f32 %v625, %v632
          %v649 = vadd.f32 %v626, %v632
          %650 = vst [vmem:[%s311] sm:$0xff] %v634
          %651 = vst [vmem:[%s311 + $0x8] sm:$0xff] %v635
          %652 = vst [vmem:[%s311 + $0x10] sm:$0xff] %v636
          %653 = vst [vmem:[%s311 + $0x18] sm:$0xff] %v637
          %654 = vst [vmem:[%s311 + $0x20] sm:$0xff] %v638
          %655 = vst [vmem:[%s311 + $0x28] sm:$0xff] %v639
          %656 = vst [vmem:[%s311 + $0x30] sm:$0xff] %v640
          %657 = vst [vmem:[%s311 + $0x38] sm:$0xff] %v641
          %658 = vst [vmem:[%s311 + $0x40] sm:$0xff] %v642
          %659 = vst [vmem:[%s311 + $0x48] sm:$0xff] %v643
          %660 = vst [vmem:[%s311 + $0x50] sm:$0xff] %v644
          %661 = vst [vmem:[%s311 + $0x58] sm:$0xff] %v645
          %662 = vst [vmem:[%s311 + $0x60] sm:$0xff] %v646
          %663 = vst [vmem:[%s311 + $0x68] sm:$0xff] %v647
          %664 = vst [vmem:[%s311 + $0x70] sm:$0xff] %v648
          %665 = vst [vmem:[%s311 + $0x78] sm:$0xff] %v649
        $region81: #{gcn_conv_model_forward.3} parent=68 // pred_fallthru
          _
        %s666 = smul.u32 16, %s18
        %p667 = scmp.lt.s32.totalorder %s666, 31
        %s668 = scalar_select %p667, %s666, 31
        %s669 = smul.addr %s668, 8
        %s670 = scalar_lea.vmem %s3, %s669
        // Predicated region
        $region82: #{gcn_conv_model_forward.3} parent=68 // pred_check
          %p671 = pneg %p119
        $region83: #{gcn_conv_model_forward.3} parent=68 // pred_check_branch
          %673 = sbr.rel (%p671) target = $region85
        $region84: #{gcn_conv_model_forward.3} parent=68 // pred_region
          %s674 = smul.u32 16, %s18
        $region85: #{gcn_conv_model_forward.3} parent=68 // pred_fallthru
          _
      $region69: #{gcn_conv_model_forward.3} parent=5 // pred_fallthru
        _
      %p675 = scmp.le.s32.totalorder 2, %s9
      // Predicated region
      $region86: #{gcn_conv_model_forward.3} parent=5 // pred_check
        %p676 = pneg %p675
      $region87: #{gcn_conv_model_forward.3} parent=5 // pred_check_branch
        %678 = sbr.rel (%p676) target = $region89
      $region88: #{gcn_conv_model_forward.3} parent=5 // pred_region
        %s679 = ssub.s32 %s9, 2
        // Predicated region
        $region90: #{gcn_conv_model_forward.3} parent=88 // pred_check
          %p680 = pneg %p125
        $region91: #{gcn_conv_model_forward.3} parent=88 // pred_check_branch
          %682 = sbr.rel (%p680) target = $region93
        $region92: #{gcn_conv_model_forward.3} parent=88 // pred_region
          %s683 = smul.u32 16, %s20
          %p684 = scmp.lt.s32.totalorder %s683, 31
          %s685 = scalar_select %p684, %s683, 31
          %s686 = smul.addr %s685, 8
          %s687 = scalar_lea.vmem %s3, %s686
        $region93: #{gcn_conv_model_forward.3} parent=88 // pred_fallthru
          _
      $region89: #{gcn_conv_model_forward.3} parent=5 // pred_fallthru
        _
    $region6: #{gcn_conv_model_forward.3} parent=1 // loop_footer
      %s13 = sadd.s32 1, %s9
    $region7: #{gcn_conv_model_forward.3} parent=1 // loop_footer_branch
      %8 = sbr.rel target = $region3
    $region8: #{gcn_conv_model_forward.3} parent=1 // loop_exit
      _

</llo_original>
